<compile_context>
chip_gen: v5e
topology: v5e:2x2
jax: 0.10.0
libtpu: 0.0.40
codegen_flags: <defaults>
</compile_context>

<pallas_src>
import jax
import jax.numpy as jnp
from jax import lax
from jax.experimental import pallas as pl
from jax.experimental.pallas import tpu as pltpu


def _sigmoid(x):
    # sigmoid(x) == 0.5 * tanh(0.5 * x) + 0.5  -> single EUP op + cheap VPU ops.
    return 0.5 * jnp.tanh(0.5 * x) + 0.5


def _lstm_layer_kernel(x_ref, wih_ref, whh_ref, b_ref, y_ref, cn_ref, h_s, c_s):
    """One LSTM layer, both directions.

    Grid = (num_directions, T // Tt); direction axis 'parallel', time axis 'arbitrary'.
      x_ref  : (Tt, B, D_in)   compute dtype (bf16); already the reversed block for d==1
      wih_ref: (1, D_in, 4H)   compute dtype        whh_ref: (1, H, 4H)
      b_ref  : (1, 1, 4H)      f32 (b_ih + b_hh)
      y_ref  : (1, Tt, B, H)   f32 output block     cn_ref: (1, B, H) f32 final cell
      h_s/c_s: (B, H)          f32 VMEM scratch carrying state across time blocks
    """
    d = pl.program_id(0)
    tb = pl.program_id(1)
    Tt, B, _ = x_ref.shape
    H = h_s.shape[-1]

    @pl.when(tb == 0)
    def _init():
        h_s[...] = jnp.zeros_like(h_s)
        c_s[...] = jnp.zeros_like(c_s)

    # Hoisted once per grid step (NOT per timestep): weight loads + bias broadcast.
    wih = wih_ref[0]                                   # (D_in, 4H)
    whh = whh_ref[0]                                   # (H,   4H)
    bias = jnp.broadcast_to(b_ref[0], (B, 4 * H)).astype(jnp.float32)

    # Forward direction walks the block 0..Tt-1; backward walks Tt-1..0.
    base = d * (Tt - 1)
    sign = 1 - 2 * d

    def step(s, carry):
        h, c = carry                                   # f32 (B, H)
        idx = base + sign * s
        x_t = x_ref[idx]                               # (B, D_in), bf16
        gates = (jnp.dot(x_t, wih, preferred_element_type=jnp.float32)
                 + jnp.dot(h.astype(whh.dtype), whh,
                           preferred_element_type=jnp.float32)
                 + bias)                               # (B, 4H) f32, order i,f,g,o
        i_g = _sigmoid(gates[:, 0 * H:1 * H])
        f_g = _sigmoid(gates[:, 1 * H:2 * H])
        g_g = jnp.tanh(gates[:, 2 * H:3 * H])
        o_g = _sigmoid(gates[:, 3 * H:4 * H])
        c_new = f_g * c + i_g * g_g
        h_new = o_g * jnp.tanh(c_new)
        y_ref[0, idx] = h_new.astype(y_ref.dtype)
        return (h_new, c_new)

    h, c = lax.fori_loop(0, Tt, step, (h_s[...], c_s[...]), unroll=(Tt <= 16))
    h_s[...] = h
    c_s[...] = c

    @pl.when(tb == pl.num_programs(1) - 1)
    def _fin():
        cn_ref[0] = c.astype(cn_ref.dtype)


def _pick_time_block(T, B, D_in, H, budget_bytes=2 << 20):
    """Largest divisor of T whose x+y block footprint stays well inside VMEM."""
    bytes_per_t = B * (2 * D_in + 4 * H)          # bf16 x row + f32 y row
    tt = int(max(1, min(T, budget_bytes // max(bytes_per_t, 1))))
    while T % tt:
        tt -= 1
    return tt


def _run_lstm_layer(x, wih_all, whh_all, bias_all, *, compute_dtype=jnp.bfloat16,
                    time_block=None):
    """x: (T, B, D_in) f32.  wih_all: (D, D_in, 4H) bf16, whh_all: (D, H, 4H) bf16,
    bias_all: (D, 1, 4H) f32.  Returns y (D, T, B, H) f32 and c_n (D, B, H) f32."""
    T, B, D_in = x.shape
    num_dirs, H, H4 = whh_all.shape
    Tt = time_block or _pick_time_block(T, B, D_in, H)
    Tb = T // Tt

    def x_map(d, tb):
        # Backward direction reads time blocks in reverse order (no jnp.flip needed).
        return (tb + d * (Tb - 1 - 2 * tb), 0, 0)

    def y_map(d, tb):
        return (d, tb + d * (Tb - 1 - 2 * tb), 0, 0)

    y, c_n = pl.pallas_call(
        _lstm_layer_kernel,
        out_shape=(
            jax.ShapeDtypeStruct((num_dirs, T, B, H), jnp.float32),
            jax.ShapeDtypeStruct((num_dirs, B, H), jnp.float32),
        ),
        grid_spec=pltpu.PrefetchScalarGridSpec(
            num_scalar_prefetch=0,
            grid=(num_dirs, Tb),
            in_specs=[
                pl.BlockSpec((Tt, B, D_in), x_map),
                pl.BlockSpec((1, D_in, H4), lambda d, tb: (d, 0, 0)),
                pl.BlockSpec((1, H, H4), lambda d, tb: (d, 0, 0)),
                pl.BlockSpec((1, 1, H4), lambda d, tb: (d, 0, 0)),
            ],
            out_specs=(
                pl.BlockSpec((1, Tt, B, H), y_map),
                pl.BlockSpec((1, B, H), lambda d, tb: (d, 0, 0)),
            ),
            scratch_shapes=[
                pltpu.VMEM((B, H), jnp.float32),
                pltpu.VMEM((B, H), jnp.float32),
            ],
        ),
        compiler_params=pltpu.CompilerParams(
            dimension_semantics=("parallel", "arbitrary")),
    )(x.astype(compute_dtype), wih_all, whh_all, bias_all)
    return y, c_n


def encoder_lstm_forward(x, params, num_layers, bidirectional,
                         compute_dtype=jnp.bfloat16):
    """Mimics EncoderLSTM.forward -> (output, (h_n, c_n))."""
    num_dirs = 2 if bidirectional else 1
    T = x.shape[0]
    h_list, c_list = [], []
    layer_in = x
    for layer in range(num_layers):
        # Pack per-direction weights: (D, D_in, 4H), (D, H, 4H), (D, 1, 4H).
        wih_all = jnp.stack(
            [jnp.asarray(params[(layer, d)][0], jnp.float32).T
             for d in range(num_dirs)]).astype(compute_dtype)
        whh_all = jnp.stack(
            [jnp.asarray(params[(layer, d)][1], jnp.float32).T
             for d in range(num_dirs)]).astype(compute_dtype)
        bias_all = jnp.stack(
            [(jnp.asarray(params[(layer, d)][2], jnp.float32)
              + jnp.asarray(params[(layer, d)][3], jnp.float32))[None, :]
             for d in range(num_dirs)])
        y_dirs, c_n_dirs = _run_lstm_layer(layer_in, wih_all, whh_all, bias_all,
                                           compute_dtype=compute_dtype)
        for d in range(num_dirs):
            # Final hidden is the last recurrence step's output: y[T-1] fwd, y[0] bwd.
            h_list.append(y_dirs[d, T - 1 if d == 0 else 0])
            c_list.append(c_n_dirs[d])
        layer_in = jnp.concatenate([y_dirs[d] for d in range(num_dirs)], axis=-1)
    output = layer_in
    return output, (jnp.stack(h_list, axis=0), jnp.stack(c_list, axis=0))


# ------------------------- pure-JAX reference (for checking) -------------------------
def _ref_lstm_dir(x, w_ih, w_hh, b_ih, b_hh, compute_dtype):
    H = w_hh.shape[1]
    B = x.shape[1]
    wih_t = jnp.asarray(w_ih, jnp.float32).T.astype(compute_dtype)
    whh_t = jnp.asarray(w_hh, jnp.float32).T.astype(compute_dtype)
    b = (jnp.asarray(b_ih, jnp.float32) + jnp.asarray(b_hh, jnp.float32))[None, :]
    h0 = jnp.zeros((B, H), jnp.float32)
    c0 = jnp.zeros((B, H), jnp.float32)

    def step(carry, x_t):
        h, c = carry
        gates = (jnp.dot(x_t.astype(compute_dtype), wih_t,
                         preferred_element_type=jnp.float32)
                 + jnp.dot(h.astype(compute_dtype), whh_t,
                           preferred_element_type=jnp.float32) + b)
        i = _sigmoid(gates[:, 0 * H:1 * H])
        f = _sigmoid(gates[:, 1 * H:2 * H])
        g = jnp.tanh(gates[:, 2 * H:3 * H])
        o = _sigmoid(gates[:, 3 * H:4 * H])
        c = f * c + i * g
        h = o * jnp.tanh(c)
        return (h, c), h

    (h_n, c_n), ys = lax.scan(step, (h0, c0), x)
    return ys, h_n, c_n


def _ref_forward(x, params, num_layers, bidirectional, compute_dtype):
    num_dirs = 2 if bidirectional else 1
    h_list, c_list = [], []
    layer_in = x
    for layer in range(num_layers):
        outs = []
        for d in range(num_dirs):
            w_ih, w_hh, b_ih, b_hh = params[(layer, d)]
            xi = jnp.flip(layer_in, axis=0) if d == 1 else layer_in
            y, h_n, c_n = _ref_lstm_dir(xi, w_ih, w_hh, b_ih, b_hh, compute_dtype)
            if d == 1:
                y = jnp.flip(y, axis=0)
            outs.append(y)
            h_list.append(h_n)
            c_list.append(c_n)
        layer_in = jnp.concatenate(outs, axis=-1)
    return layer_in, (jnp.stack(h_list), jnp.stack(c_list))


# ------------------------------------- main -------------------------------------
if __name__ == "__main__":
    T, B = 8, 2                  # seq_len, batch (batch_first=False)
    INPUT_SIZE = 16
    HIDDEN = 32
    NUM_LAYERS = 2
    BIDIRECTIONAL = True
    num_dirs = 2 if BIDIRECTIONAL else 1

    key = jax.random.PRNGKey(0)
    k_x, k_p = jax.random.split(key)
    x = jax.random.normal(k_x, (T, B, INPUT_SIZE), jnp.float32)

    # PyTorch-style uniform(-1/sqrt(H), 1/sqrt(H)) init.
    bound = 1.0 / jnp.sqrt(jnp.float32(HIDDEN))
    params = {}
    pk = k_p
    for layer in range(NUM_LAYERS):
        d_in = INPUT_SIZE if layer == 0 else num_dirs * HIDDEN
        for d in range(num_dirs):
            pk, k1, k2, k3, k4 = jax.random.split(pk, 5)
            w_ih = jax.random.uniform(k1, (4 * HIDDEN, d_in), jnp.float32, -bound, bound)
            w_hh = jax.random.uniform(k2, (4 * HIDDEN, HIDDEN), jnp.float32, -bound, bound)
            b_ih = jax.random.uniform(k3, (4 * HIDDEN,), jnp.float32, -bound, bound)
            b_hh = jax.random.uniform(k4, (4 * HIDDEN,), jnp.float32, -bound, bound)
            params[(layer, d)] = (w_ih, w_hh, b_ih, b_hh)

    out, (h_n, c_n) = encoder_lstm_forward(x, params, NUM_LAYERS, BIDIRECTIONAL)
    jax.block_until_ready((out, h_n, c_n))

    assert out.shape == (T, B, num_dirs * HIDDEN)
    assert h_n.shape == (NUM_LAYERS * num_dirs, B, HIDDEN)
    assert c_n.shape == (NUM_LAYERS * num_dirs, B, HIDDEN)

    # Check 1: against a reference using the same bf16-matmul / f32-state numerics.
    m_out, (m_h, m_c) = _ref_forward(x, params, NUM_LAYERS, BIDIRECTIONAL, jnp.bfloat16)
    assert jnp.allclose(out, m_out, atol=2e-3, rtol=2e-3)
    assert jnp.allclose(h_n, m_h, atol=2e-3, rtol=2e-3)
    assert jnp.allclose(c_n, m_c, atol=2e-3, rtol=2e-3)

    # Check 2 (coarse): against a full-f32 reference — semantics of the PyTorch module.
    f_out, (f_h, f_c) = _ref_forward(x, params, NUM_LAYERS, BIDIRECTIONAL, jnp.float32)
    assert jnp.allclose(out, f_out, atol=7.5e-2, rtol=7.5e-2)
    assert jnp.allclose(h_n, f_h, atol=7.5e-2, rtol=7.5e-2)
    assert jnp.allclose(c_n, f_c, atol=7.5e-2, rtol=7.5e-2)

    print("KERNEL_OK")
</pallas_src>

<mosaic_0001>
module attributes {stable_mosaic.version = 11 : i64} {
  func.func @_lstm_layer_kernel(%arg0: i32, %arg1: i32, %arg2: memref<8x2x16xbf16, #tpu.memory_space<vmem>>, %arg3: memref<1x16x128xbf16, #tpu.memory_space<vmem>>, %arg4: memref<1x32x128xbf16, #tpu.memory_space<vmem>>, %arg5: memref<1x1x128xf32, #tpu.memory_space<vmem>>, %arg6: memref<1x8x2x32xf32, #tpu.memory_space<vmem>>, %arg7: memref<1x2x32xf32, #tpu.memory_space<vmem>>, %arg8: memref<2x32xf32, #tpu.memory_space<vmem>>, %arg9: memref<2x32xf32, #tpu.memory_space<vmem>>) attributes {dimension_semantics = [#tpu.dimension_semantics<parallel>, #tpu.dimension_semantics<arbitrary>], iteration_bounds = array<i64: 2, 1>, scalar_prefetch = 0 : i64, scratch_operands = 2 : i64, tpu.core_type = #tpu.core_type<tc>, window_params = [{transform_indices = @transform_0, window_bounds = array<i64: 8, 2, 16>}, {transform_indices = @transform_1, window_bounds = array<i64: 1, 16, 128>}, {transform_indices = @transform_2, window_bounds = array<i64: 1, 32, 128>}, {transform_indices = @transform_3, window_bounds = array<i64: 1, 1, 128>}, {transform_indices = @transform_4, window_bounds = array<i64: 1, 8, 2, 32>}, {transform_indices = @transform_5, window_bounds = array<i64: 1, 2, 32>}]} {
    %c0_i32 = arith.constant 0 : i32
    %0 = arith.cmpi eq, %arg1, %c0_i32 : i32
    %1 = arith.extui %0 : i1 to i32
    %c0_i32_0 = arith.constant 0 : i32
    %2 = arith.cmpi ne, %1, %c0_i32_0 : i32
    scf.if %2 {
      %cst_150 = arith.constant 0.000000e+00 : f32
      %381 = vector.broadcast %cst_150 : f32 to vector<2x32xf32>
      %c0_151 = arith.constant 0 : index
      %c0_152 = arith.constant 0 : index
      %382 = vector.load %arg8[%c0_151, %c0_152] : memref<2x32xf32, #tpu.memory_space<vmem>>, vector<2x32xf32>
      tpu.vector_store %arg8[%c0_151, %c0_152], %381 {strides = array<i32>} : memref<2x32xf32, #tpu.memory_space<vmem>>, vector<2x32xf32>,
      %cst_153 = arith.constant 0.000000e+00 : f32
      %383 = vector.broadcast %cst_153 : f32 to vector<2x32xf32>
      %c0_154 = arith.constant 0 : index
      %c0_155 = arith.constant 0 : index
      %384 = vector.load %arg9[%c0_154, %c0_155] : memref<2x32xf32, #tpu.memory_space<vmem>>, vector<2x32xf32>
      tpu.vector_store %arg9[%c0_154, %c0_155], %383 {strides = array<i32>} : memref<2x32xf32, #tpu.memory_space<vmem>>, vector<2x32xf32>,
    } else {
    }
    %c0 = arith.constant 0 : index
    %c0_1 = arith.constant 0 : index
    %c0_2 = arith.constant 0 : index
    %3 = vector.load %arg3[%c0, %c0_1, %c0_2] : memref<1x16x128xbf16, #tpu.memory_space<vmem>>, vector<1x16x128xbf16>
    %4 = vector.shape_cast %3 : vector<1x16x128xbf16> to vector<16x128xbf16>
    %c0_3 = arith.constant 0 : index
    %c0_4 = arith.constant 0 : index
    %c0_5 = arith.constant 0 : index
    %5 = vector.load %arg4[%c0_3, %c0_4, %c0_5] : memref<1x32x128xbf16, #tpu.memory_space<vmem>>, vector<1x32x128xbf16>
    %6 = vector.shape_cast %5 : vector<1x32x128xbf16> to vector<32x128xbf16>
    %c0_6 = arith.constant 0 : index
    %c0_7 = arith.constant 0 : index
    %c0_8 = arith.constant 0 : index
    %7 = vector.load %arg5[%c0_6, %c0_7, %c0_8] : memref<1x1x128xf32, #tpu.memory_space<vmem>>, vector<1x1x128xf32>
    %8 = vector.shape_cast %7 : vector<1x1x128xf32> to vector<1x128xf32>
    %9 = vector.shape_cast %8 : vector<1x128xf32> to vector<1x128xf32>
    %10 = vector.broadcast %9 : vector<1x128xf32> to vector<2x128xf32>
    %c7_i32 = arith.constant 7 : i32
    %11 = arith.muli %arg0, %c7_i32 : i32
    %c2_i32 = arith.constant 2 : i32
    %12 = arith.muli %c2_i32, %arg0 : i32
    %c1_i32 = arith.constant 1 : i32
    %13 = arith.subi %c1_i32, %12 : i32
    %c0_9 = arith.constant 0 : index
    %c0_10 = arith.constant 0 : index
    %14 = vector.load %arg8[%c0_9, %c0_10] : memref<2x32xf32, #tpu.memory_space<vmem>>, vector<2x32xf32>
    %c0_11 = arith.constant 0 : index
    %c0_12 = arith.constant 0 : index
    %15 = vector.load %arg9[%c0_11, %c0_12] : memref<2x32xf32, #tpu.memory_space<vmem>>, vector<2x32xf32>
    %c0_i32_13 = arith.constant 0 : i32
    %16 = arith.muli %13, %c0_i32_13 : i32
    %17 = arith.addi %11, %16 : i32
    %18 = arith.index_cast %17 : i32 to index
    %c0_14 = arith.constant 0 : index
    %c0_15 = arith.constant 0 : index
    %19 = vector.load %arg2[%18, %c0_14, %c0_15] : memref<8x2x16xbf16, #tpu.memory_space<vmem>>, vector<1x2x16xbf16>
    %20 = vector.shape_cast %19 : vector<1x2x16xbf16> to vector<2x16xbf16>
    %cst = arith.constant dense<0.000000e+00> : vector<2x128xf32>
    %21 = tpu.matmul %20, %4, %cst {dimension_numbers = #tpu.dot_dimension_numbers<[1], [0], [0], [1], [0, 0, 1, 1], [], []>} : vector<2x16xbf16>, vector<16x128xbf16>, vector<2x128xf32> -> vector<2x128xf32>
    %22 = arith.truncf %14 : vector<2x32xf32> to vector<2x32xbf16>
    %cst_16 = arith.constant dense<0.000000e+00> : vector<2x128xf32>
    %23 = tpu.matmul %22, %6, %cst_16 {dimension_numbers = #tpu.dot_dimension_numbers<[1], [0], [0], [1], [0, 0, 1, 1], [], []>} : vector<2x32xbf16>, vector<32x128xbf16>, vector<2x128xf32> -> vector<2x128xf32>
    %24 = arith.addf %21, %23 : vector<2x128xf32>
    %25 = arith.addf %24, %10 : vector<2x128xf32>
    %26 = vector.extract_strided_slice %25 {offsets = [0, 0], sizes = [2, 32], strides = [1, 1]} : vector<2x128xf32> to vector<2x32xf32>
    %cst_17 = arith.constant 5.000000e-01 : f32
    %27 = vector.broadcast %cst_17 : f32 to vector<2x32xf32>
    %28 = arith.mulf %27, %26 : vector<2x32xf32>
    %29 = math.tanh %28 : vector<2x32xf32>
    %cst_18 = arith.constant 5.000000e-01 : f32
    %30 = vector.broadcast %cst_18 : f32 to vector<2x32xf32>
    %31 = arith.mulf %30, %29 : vector<2x32xf32>
    %cst_19 = arith.constant 5.000000e-01 : f32
    %32 = vector.broadcast %cst_19 : f32 to vector<2x32xf32>
    %33 = arith.addf %31, %32 : vector<2x32xf32>
    %34 = vector.extract_strided_slice %25 {offsets = [0, 32], sizes = [2, 32], strides = [1, 1]} : vector<2x128xf32> to vector<2x32xf32>
    %cst_20 = arith.constant 5.000000e-01 : f32
    %35 = vector.broadcast %cst_20 : f32 to vector<2x32xf32>
    %36 = arith.mulf %35, %34 : vector<2x32xf32>
    %37 = math.tanh %36 : vector<2x32xf32>
    %cst_21 = arith.constant 5.000000e-01 : f32
    %38 = vector.broadcast %cst_21 : f32 to vector<2x32xf32>
    %39 = arith.mulf %38, %37 : vector<2x32xf32>
    %cst_22 = arith.constant 5.000000e-01 : f32
    %40 = vector.broadcast %cst_22 : f32 to vector<2x32xf32>
    %41 = arith.addf %39, %40 : vector<2x32xf32>
    %42 = vector.extract_strided_slice %25 {offsets = [0, 64], sizes = [2, 32], strides = [1, 1]} : vector<2x128xf32> to vector<2x32xf32>
    %43 = math.tanh %42 : vector<2x32xf32>
    %44 = vector.extract_strided_slice %25 {offsets = [0, 96], sizes = [2, 32], strides = [1, 1]} : vector<2x128xf32> to vector<2x32xf32>
    %cst_23 = arith.constant 5.000000e-01 : f32
    %45 = vector.broadcast %cst_23 : f32 to vector<2x32xf32>
    %46 = arith.mulf %45, %44 : vector<2x32xf32>
    %47 = math.tanh %46 : vector<2x32xf32>
    %cst_24 = arith.constant 5.000000e-01 : f32
    %48 = vector.broadcast %cst_24 : f32 to vector<2x32xf32>
    %49 = arith.mulf %48, %47 : vector<2x32xf32>
    %cst_25 = arith.constant 5.000000e-01 : f32
    %50 = vector.broadcast %cst_25 : f32 to vector<2x32xf32>
    %51 = arith.addf %49, %50 : vector<2x32xf32>
    %52 = arith.mulf %41, %15 : vector<2x32xf32>
    %53 = arith.mulf %33, %43 : vector<2x32xf32>
    %54 = arith.addf %52, %53 : vector<2x32xf32>
    %55 = math.tanh %54 : vector<2x32xf32>
    %56 = arith.mulf %51, %55 : vector<2x32xf32>
    %c0_26 = arith.constant 0 : index
    %57 = arith.index_cast %17 : i32 to index
    %c0_27 = arith.constant 0 : index
    %c0_28 = arith.constant 0 : index
    %58 = vector.load %arg6[%c0_26, %57, %c0_27, %c0_28] : memref<1x8x2x32xf32, #tpu.memory_space<vmem>>, vector<1x1x2x32xf32>
    %59 = vector.shape_cast %58 : vector<1x1x2x32xf32> to vector<2x32xf32>
    %60 = vector.shape_cast %56 : vector<2x32xf32> to vector<1x1x2x32xf32>
    tpu.vector_store %arg6[%c0_26, %57, %c0_27, %c0_28], %60 {strides = array<i32>} : memref<1x8x2x32xf32, #tpu.memory_space<vmem>>, vector<1x1x2x32xf32>,
    %c1_i32_29 = arith.constant 1 : i32
    %61 = arith.muli %13, %c1_i32_29 : i32
    %62 = arith.addi %11, %61 : i32
    %63 = arith.index_cast %62 : i32 to index
    %c0_30 = arith.constant 0 : index
    %c0_31 = arith.constant 0 : index
    %64 = vector.load %arg2[%63, %c0_30, %c0_31] : memref<8x2x16xbf16, #tpu.memory_space<vmem>>, vector<1x2x16xbf16>
    %65 = vector.shape_cast %64 : vector<1x2x16xbf16> to vector<2x16xbf16>
    %cst_32 = arith.constant dense<0.000000e+00> : vector<2x128xf32>
    %66 = tpu.matmul %65, %4, %cst_32 {dimension_numbers = #tpu.dot_dimension_numbers<[1], [0], [0], [1], [0, 0, 1, 1], [], []>} : vector<2x16xbf16>, vector<16x128xbf16>, vector<2x128xf32> -> vector<2x128xf32>
    %67 = arith.truncf %56 : vector<2x32xf32> to vector<2x32xbf16>
    %cst_33 = arith.constant dense<0.000000e+00> : vector<2x128xf32>
    %68 = tpu.matmul %67, %6, %cst_33 {dimension_numbers = #tpu.dot_dimension_numbers<[1], [0], [0], [1], [0, 0, 1, 1], [], []>} : vector<2x32xbf16>, vector<32x128xbf16>, vector<2x128xf32> -> vector<2x128xf32>
    %69 = arith.addf %66, %68 : vector<2x128xf32>
    %70 = arith.addf %69, %10 : vector<2x128xf32>
    %71 = vector.extract_strided_slice %70 {offsets = [0, 0], sizes = [2, 32], strides = [1, 1]} : vector<2x128xf32> to vector<2x32xf32>
    %cst_34 = arith.constant 5.000000e-01 : f32
    %72 = vector.broadcast %cst_34 : f32 to vector<2x32xf32>
    %73 = arith.mulf %72, %71 : vector<2x32xf32>
    %74 = math.tanh %73 : vector<2x32xf32>
    %cst_35 = arith.constant 5.000000e-01 : f32
    %75 = vector.broadcast %cst_35 : f32 to vector<2x32xf32>
    %76 = arith.mulf %75, %74 : vector<2x32xf32>
    %cst_36 = arith.constant 5.000000e-01 : f32
    %77 = vector.broadcast %cst_36 : f32 to vector<2x32xf32>
    %78 = arith.addf %76, %77 : vector<2x32xf32>
    %79 = vector.extract_strided_slice %70 {offsets = [0, 32], sizes = [2, 32], strides = [1, 1]} : vector<2x128xf32> to vector<2x32xf32>
    %cst_37 = arith.constant 5.000000e-01 : f32
    %80 = vector.broadcast %cst_37 : f32 to vector<2x32xf32>
    %81 = arith.mulf %80, %79 : vector<2x32xf32>
    %82 = math.tanh %81 : vector<2x32xf32>
    %cst_38 = arith.constant 5.000000e-01 : f32
    %83 = vector.broadcast %cst_38 : f32 to vector<2x32xf32>
    %84 = arith.mulf %83, %82 : vector<2x32xf32>
    %cst_39 = arith.constant 5.000000e-01 : f32
    %85 = vector.broadcast %cst_39 : f32 to vector<2x32xf32>
    %86 = arith.addf %84, %85 : vector<2x32xf32>
    %87 = vector.extract_strided_slice %70 {offsets = [0, 64], sizes = [2, 32], strides = [1, 1]} : vector<2x128xf32> to vector<2x32xf32>
    %88 = math.tanh %87 : vector<2x32xf32>
    %89 = vector.extract_strided_slice %70 {offsets = [0, 96], sizes = [2, 32], strides = [1, 1]} : vector<2x128xf32> to vector<2x32xf32>
    %cst_40 = arith.constant 5.000000e-01 : f32
    %90 = vector.broadcast %cst_40 : f32 to vector<2x32xf32>
    %91 = arith.mulf %90, %89 : vector<2x32xf32>
    %92 = math.tanh %91 : vector<2x32xf32>
    %cst_41 = arith.constant 5.000000e-01 : f32
    %93 = vector.broadcast %cst_41 : f32 to vector<2x32xf32>
    %94 = arith.mulf %93, %92 : vector<2x32xf32>
    %cst_42 = arith.constant 5.000000e-01 : f32
    %95 = vector.broadcast %cst_42 : f32 to vector<2x32xf32>
    %96 = arith.addf %94, %95 : vector<2x32xf32>
    %97 = arith.mulf %86, %54 : vector<2x32xf32>
    %98 = arith.mulf %78, %88 : vector<2x32xf32>
    %99 = arith.addf %97, %98 : vector<2x32xf32>
    %100 = math.tanh %99 : vector<2x32xf32>
    %101 = arith.mulf %96, %100 : vector<2x32xf32>
    %c0_43 = arith.constant 0 : index
    %102 = arith.index_cast %62 : i32 to index
    %c0_44 = arith.constant 0 : index
    %c0_45 = arith.constant 0 : index
    %103 = vector.load %arg6[%c0_43, %102, %c0_44, %c0_45] : memref<1x8x2x32xf32, #tpu.memory_space<vmem>>, vector<1x1x2x32xf32>
    %104 = vector.shape_cast %103 : vector<1x1x2x32xf32> to vector<2x32xf32>
    %105 = vector.shape_cast %101 : vector<2x32xf32> to vector<1x1x2x32xf32>
    tpu.vector_store %arg6[%c0_43, %102, %c0_44, %c0_45], %105 {strides = array<i32>} : memref<1x8x2x32xf32, #tpu.memory_space<vmem>>, vector<1x1x2x32xf32>,
    %c2_i32_46 = arith.constant 2 : i32
    %106 = arith.muli %13, %c2_i32_46 : i32
    %107 = arith.addi %11, %106 : i32
    %108 = arith.index_cast %107 : i32 to index
    %c0_47 = arith.constant 0 : index
    %c0_48 = arith.constant 0 : index
    %109 = vector.load %arg2[%108, %c0_47, %c0_48] : memref<8x2x16xbf16, #tpu.memory_space<vmem>>, vector<1x2x16xbf16>
    %110 = vector.shape_cast %109 : vector<1x2x16xbf16> to vector<2x16xbf16>
    %cst_49 = arith.constant dense<0.000000e+00> : vector<2x128xf32>
    %111 = tpu.matmul %110, %4, %cst_49 {dimension_numbers = #tpu.dot_dimension_numbers<[1], [0], [0], [1], [0, 0, 1, 1], [], []>} : vector<2x16xbf16>, vector<16x128xbf16>, vector<2x128xf32> -> vector<2x128xf32>
    %112 = arith.truncf %101 : vector<2x32xf32> to vector<2x32xbf16>
    %cst_50 = arith.constant dense<0.000000e+00> : vector<2x128xf32>
    %113 = tpu.matmul %112, %6, %cst_50 {dimension_numbers = #tpu.dot_dimension_numbers<[1], [0], [0], [1], [0, 0, 1, 1], [], []>} : vector<2x32xbf16>, vector<32x128xbf16>, vector<2x128xf32> -> vector<2x128xf32>
    %114 = arith.addf %111, %113 : vector<2x128xf32>
    %115 = arith.addf %114, %10 : vector<2x128xf32>
    %116 = vector.extract_strided_slice %115 {offsets = [0, 0], sizes = [2, 32], strides = [1, 1]} : vector<2x128xf32> to vector<2x32xf32>
    %cst_51 = arith.constant 5.000000e-01 : f32
    %117 = vector.broadcast %cst_51 : f32 to vector<2x32xf32>
    %118 = arith.mulf %117, %116 : vector<2x32xf32>
    %119 = math.tanh %118 : vector<2x32xf32>
    %cst_52 = arith.constant 5.000000e-01 : f32
    %120 = vector.broadcast %cst_52 : f32 to vector<2x32xf32>
    %121 = arith.mulf %120, %119 : vector<2x32xf32>
    %cst_53 = arith.constant 5.000000e-01 : f32
    %122 = vector.broadcast %cst_53 : f32 to vector<2x32xf32>
    %123 = arith.addf %121, %122 : vector<2x32xf32>
    %124 = vector.extract_strided_slice %115 {offsets = [0, 32], sizes = [2, 32], strides = [1, 1]} : vector<2x128xf32> to vector<2x32xf32>
    %cst_54 = arith.constant 5.000000e-01 : f32
    %125 = vector.broadcast %cst_54 : f32 to vector<2x32xf32>
    %126 = arith.mulf %125, %124 : vector<2x32xf32>
    %127 = math.tanh %126 : vector<2x32xf32>
    %cst_55 = arith.constant 5.000000e-01 : f32
    %128 = vector.broadcast %cst_55 : f32 to vector<2x32xf32>
    %129 = arith.mulf %128, %127 : vector<2x32xf32>
    %cst_56 = arith.constant 5.000000e-01 : f32
    %130 = vector.broadcast %cst_56 : f32 to vector<2x32xf32>
    %131 = arith.addf %129, %130 : vector<2x32xf32>
    %132 = vector.extract_strided_slice %115 {offsets = [0, 64], sizes = [2, 32], strides = [1, 1]} : vector<2x128xf32> to vector<2x32xf32>
    %133 = math.tanh %132 : vector<2x32xf32>
    %134 = vector.extract_strided_slice %115 {offsets = [0, 96], sizes = [2, 32], strides = [1, 1]} : vector<2x128xf32> to vector<2x32xf32>
    %cst_57 = arith.constant 5.000000e-01 : f32
    %135 = vector.broadcast %cst_57 : f32 to vector<2x32xf32>
    %136 = arith.mulf %135, %134 : vector<2x32xf32>
    %137 = math.tanh %136 : vector<2x32xf32>
    %cst_58 = arith.constant 5.000000e-01 : f32
    %138 = vector.broadcast %cst_58 : f32 to vector<2x32xf32>
    %139 = arith.mulf %138, %137 : vector<2x32xf32>
    %cst_59 = arith.constant 5.000000e-01 : f32
    %140 = vector.broadcast %cst_59 : f32 to vector<2x32xf32>
    %141 = arith.addf %139, %140 : vector<2x32xf32>
    %142 = arith.mulf %131, %99 : vector<2x32xf32>
    %143 = arith.mulf %123, %133 : vector<2x32xf32>
    %144 = arith.addf %142, %143 : vector<2x32xf32>
    %145 = math.tanh %144 : vector<2x32xf32>
    %146 = arith.mulf %141, %145 : vector<2x32xf32>
    %c0_60 = arith.constant 0 : index
    %147 = arith.index_cast %107 : i32 to index
    %c0_61 = arith.constant 0 : index
    %c0_62 = arith.constant 0 : index
    %148 = vector.load %arg6[%c0_60, %147, %c0_61, %c0_62] : memref<1x8x2x32xf32, #tpu.memory_space<vmem>>, vector<1x1x2x32xf32>
    %149 = vector.shape_cast %148 : vector<1x1x2x32xf32> to vector<2x32xf32>
    %150 = vector.shape_cast %146 : vector<2x32xf32> to vector<1x1x2x32xf32>
    tpu.vector_store %arg6[%c0_60, %147, %c0_61, %c0_62], %150 {strides = array<i32>} : memref<1x8x2x32xf32, #tpu.memory_space<vmem>>, vector<1x1x2x32xf32>,
    %c3_i32 = arith.constant 3 : i32
    %151 = arith.muli %13, %c3_i32 : i32
    %152 = arith.addi %11, %151 : i32
    %153 = arith.index_cast %152 : i32 to index
    %c0_63 = arith.constant 0 : index
    %c0_64 = arith.constant 0 : index
    %154 = vector.load %arg2[%153, %c0_63, %c0_64] : memref<8x2x16xbf16, #tpu.memory_space<vmem>>, vector<1x2x16xbf16>
    %155 = vector.shape_cast %154 : vector<1x2x16xbf16> to vector<2x16xbf16>
    %cst_65 = arith.constant dense<0.000000e+00> : vector<2x128xf32>
    %156 = tpu.matmul %155, %4, %cst_65 {dimension_numbers = #tpu.dot_dimension_numbers<[1], [0], [0], [1], [0, 0, 1, 1], [], []>} : vector<2x16xbf16>, vector<16x128xbf16>, vector<2x128xf32> -> vector<2x128xf32>
    %157 = arith.truncf %146 : vector<2x32xf32> to vector<2x32xbf16>
    %cst_66 = arith.constant dense<0.000000e+00> : vector<2x128xf32>
    %158 = tpu.matmul %157, %6, %cst_66 {dimension_numbers = #tpu.dot_dimension_numbers<[1], [0], [0], [1], [0, 0, 1, 1], [], []>} : vector<2x32xbf16>, vector<32x128xbf16>, vector<2x128xf32> -> vector<2x128xf32>
    %159 = arith.addf %156, %158 : vector<2x128xf32>
    %160 = arith.addf %159, %10 : vector<2x128xf32>
    %161 = vector.extract_strided_slice %160 {offsets = [0, 0], sizes = [2, 32], strides = [1, 1]} : vector<2x128xf32> to vector<2x32xf32>
    %cst_67 = arith.constant 5.000000e-01 : f32
    %162 = vector.broadcast %cst_67 : f32 to vector<2x32xf32>
    %163 = arith.mulf %162, %161 : vector<2x32xf32>
    %164 = math.tanh %163 : vector<2x32xf32>
    %cst_68 = arith.constant 5.000000e-01 : f32
    %165 = vector.broadcast %cst_68 : f32 to vector<2x32xf32>
    %166 = arith.mulf %165, %164 : vector<2x32xf32>
    %cst_69 = arith.constant 5.000000e-01 : f32
    %167 = vector.broadcast %cst_69 : f32 to vector<2x32xf32>
    %168 = arith.addf %166, %167 : vector<2x32xf32>
    %169 = vector.extract_strided_slice %160 {offsets = [0, 32], sizes = [2, 32], strides = [1, 1]} : vector<2x128xf32> to vector<2x32xf32>
    %cst_70 = arith.constant 5.000000e-01 : f32
    %170 = vector.broadcast %cst_70 : f32 to vector<2x32xf32>
    %171 = arith.mulf %170, %169 : vector<2x32xf32>
    %172 = math.tanh %171 : vector<2x32xf32>
    %cst_71 = arith.constant 5.000000e-01 : f32
    %173 = vector.broadcast %cst_71 : f32 to vector<2x32xf32>
    %174 = arith.mulf %173, %172 : vector<2x32xf32>
    %cst_72 = arith.constant 5.000000e-01 : f32
    %175 = vector.broadcast %cst_72 : f32 to vector<2x32xf32>
    %176 = arith.addf %174, %175 : vector<2x32xf32>
    %177 = vector.extract_strided_slice %160 {offsets = [0, 64], sizes = [2, 32], strides = [1, 1]} : vector<2x128xf32> to vector<2x32xf32>
    %178 = math.tanh %177 : vector<2x32xf32>
    %179 = vector.extract_strided_slice %160 {offsets = [0, 96], sizes = [2, 32], strides = [1, 1]} : vector<2x128xf32> to vector<2x32xf32>
    %cst_73 = arith.constant 5.000000e-01 : f32
    %180 = vector.broadcast %cst_73 : f32 to vector<2x32xf32>
    %181 = arith.mulf %180, %179 : vector<2x32xf32>
    %182 = math.tanh %181 : vector<2x32xf32>
    %cst_74 = arith.constant 5.000000e-01 : f32
    %183 = vector.broadcast %cst_74 : f32 to vector<2x32xf32>
    %184 = arith.mulf %183, %182 : vector<2x32xf32>
    %cst_75 = arith.constant 5.000000e-01 : f32
    %185 = vector.broadcast %cst_75 : f32 to vector<2x32xf32>
    %186 = arith.addf %184, %185 : vector<2x32xf32>
    %187 = arith.mulf %176, %144 : vector<2x32xf32>
    %188 = arith.mulf %168, %178 : vector<2x32xf32>
    %189 = arith.addf %187, %188 : vector<2x32xf32>
    %190 = math.tanh %189 : vector<2x32xf32>
    %191 = arith.mulf %186, %190 : vector<2x32xf32>
    %c0_76 = arith.constant 0 : index
    %192 = arith.index_cast %152 : i32 to index
    %c0_77 = arith.constant 0 : index
    %c0_78 = arith.constant 0 : index
    %193 = vector.load %arg6[%c0_76, %192, %c0_77, %c0_78] : memref<1x8x2x32xf32, #tpu.memory_space<vmem>>, vector<1x1x2x32xf32>
    %194 = vector.shape_cast %193 : vector<1x1x2x32xf32> to vector<2x32xf32>
    %195 = vector.shape_cast %191 : vector<2x32xf32> to vector<1x1x2x32xf32>
    tpu.vector_store %arg6[%c0_76, %192, %c0_77, %c0_78], %195 {strides = array<i32>} : memref<1x8x2x32xf32, #tpu.memory_space<vmem>>, vector<1x1x2x32xf32>,
    %c4_i32 = arith.constant 4 : i32
    %196 = arith.muli %13, %c4_i32 : i32
    %197 = arith.addi %11, %196 : i32
    %198 = arith.index_cast %197 : i32 to index
    %c0_79 = arith.constant 0 : index
    %c0_80 = arith.constant 0 : index
    %199 = vector.load %arg2[%198, %c0_79, %c0_80] : memref<8x2x16xbf16, #tpu.memory_space<vmem>>, vector<1x2x16xbf16>
    %200 = vector.shape_cast %199 : vector<1x2x16xbf16> to vector<2x16xbf16>
    %cst_81 = arith.constant dense<0.000000e+00> : vector<2x128xf32>
    %201 = tpu.matmul %200, %4, %cst_81 {dimension_numbers = #tpu.dot_dimension_numbers<[1], [0], [0], [1], [0, 0, 1, 1], [], []>} : vector<2x16xbf16>, vector<16x128xbf16>, vector<2x128xf32> -> vector<2x128xf32>
    %202 = arith.truncf %191 : vector<2x32xf32> to vector<2x32xbf16>
    %cst_82 = arith.constant dense<0.000000e+00> : vector<2x128xf32>
    %203 = tpu.matmul %202, %6, %cst_82 {dimension_numbers = #tpu.dot_dimension_numbers<[1], [0], [0], [1], [0, 0, 1, 1], [], []>} : vector<2x32xbf16>, vector<32x128xbf16>, vector<2x128xf32> -> vector<2x128xf32>
    %204 = arith.addf %201, %203 : vector<2x128xf32>
    %205 = arith.addf %204, %10 : vector<2x128xf32>
    %206 = vector.extract_strided_slice %205 {offsets = [0, 0], sizes = [2, 32], strides = [1, 1]} : vector<2x128xf32> to vector<2x32xf32>
    %cst_83 = arith.constant 5.000000e-01 : f32
    %207 = vector.broadcast %cst_83 : f32 to vector<2x32xf32>
    %208 = arith.mulf %207, %206 : vector<2x32xf32>
    %209 = math.tanh %208 : vector<2x32xf32>
    %cst_84 = arith.constant 5.000000e-01 : f32
    %210 = vector.broadcast %cst_84 : f32 to vector<2x32xf32>
    %211 = arith.mulf %210, %209 : vector<2x32xf32>
    %cst_85 = arith.constant 5.000000e-01 : f32
    %212 = vector.broadcast %cst_85 : f32 to vector<2x32xf32>
    %213 = arith.addf %211, %212 : vector<2x32xf32>
    %214 = vector.extract_strided_slice %205 {offsets = [0, 32], sizes = [2, 32], strides = [1, 1]} : vector<2x128xf32> to vector<2x32xf32>
    %cst_86 = arith.constant 5.000000e-01 : f32
    %215 = vector.broadcast %cst_86 : f32 to vector<2x32xf32>
    %216 = arith.mulf %215, %214 : vector<2x32xf32>
    %217 = math.tanh %216 : vector<2x32xf32>
    %cst_87 = arith.constant 5.000000e-01 : f32
    %218 = vector.broadcast %cst_87 : f32 to vector<2x32xf32>
    %219 = arith.mulf %218, %217 : vector<2x32xf32>
    %cst_88 = arith.constant 5.000000e-01 : f32
    %220 = vector.broadcast %cst_88 : f32 to vector<2x32xf32>
    %221 = arith.addf %219, %220 : vector<2x32xf32>
    %222 = vector.extract_strided_slice %205 {offsets = [0, 64], sizes = [2, 32], strides = [1, 1]} : vector<2x128xf32> to vector<2x32xf32>
    %223 = math.tanh %222 : vector<2x32xf32>
    %224 = vector.extract_strided_slice %205 {offsets = [0, 96], sizes = [2, 32], strides = [1, 1]} : vector<2x128xf32> to vector<2x32xf32>
    %cst_89 = arith.constant 5.000000e-01 : f32
    %225 = vector.broadcast %cst_89 : f32 to vector<2x32xf32>
    %226 = arith.mulf %225, %224 : vector<2x32xf32>
    %227 = math.tanh %226 : vector<2x32xf32>
    %cst_90 = arith.constant 5.000000e-01 : f32
    %228 = vector.broadcast %cst_90 : f32 to vector<2x32xf32>
    %229 = arith.mulf %228, %227 : vector<2x32xf32>
    %cst_91 = arith.constant 5.000000e-01 : f32
    %230 = vector.broadcast %cst_91 : f32 to vector<2x32xf32>
    %231 = arith.addf %229, %230 : vector<2x32xf32>
    %232 = arith.mulf %221, %189 : vector<2x32xf32>
    %233 = arith.mulf %213, %223 : vector<2x32xf32>
    %234 = arith.addf %232, %233 : vector<2x32xf32>
    %235 = math.tanh %234 : vector<2x32xf32>
    %236 = arith.mulf %231, %235 : vector<2x32xf32>
    %c0_92 = arith.constant 0 : index
    %237 = arith.index_cast %197 : i32 to index
    %c0_93 = arith.constant 0 : index
    %c0_94 = arith.constant 0 : index
    %238 = vector.load %arg6[%c0_92, %237, %c0_93, %c0_94] : memref<1x8x2x32xf32, #tpu.memory_space<vmem>>, vector<1x1x2x32xf32>
    %239 = vector.shape_cast %238 : vector<1x1x2x32xf32> to vector<2x32xf32>
    %240 = vector.shape_cast %236 : vector<2x32xf32> to vector<1x1x2x32xf32>
    tpu.vector_store %arg6[%c0_92, %237, %c0_93, %c0_94], %240 {strides = array<i32>} : memref<1x8x2x32xf32, #tpu.memory_space<vmem>>, vector<1x1x2x32xf32>,
    %c5_i32 = arith.constant 5 : i32
    %241 = arith.muli %13, %c5_i32 : i32
    %242 = arith.addi %11, %241 : i32
    %243 = arith.index_cast %242 : i32 to index
    %c0_95 = arith.constant 0 : index
    %c0_96 = arith.constant 0 : index
    %244 = vector.load %arg2[%243, %c0_95, %c0_96] : memref<8x2x16xbf16, #tpu.memory_space<vmem>>, vector<1x2x16xbf16>
    %245 = vector.shape_cast %244 : vector<1x2x16xbf16> to vector<2x16xbf16>
    %cst_97 = arith.constant dense<0.000000e+00> : vector<2x128xf32>
    %246 = tpu.matmul %245, %4, %cst_97 {dimension_numbers = #tpu.dot_dimension_numbers<[1], [0], [0], [1], [0, 0, 1, 1], [], []>} : vector<2x16xbf16>, vector<16x128xbf16>, vector<2x128xf32> -> vector<2x128xf32>
    %247 = arith.truncf %236 : vector<2x32xf32> to vector<2x32xbf16>
    %cst_98 = arith.constant dense<0.000000e+00> : vector<2x128xf32>
    %248 = tpu.matmul %247, %6, %cst_98 {dimension_numbers = #tpu.dot_dimension_numbers<[1], [0], [0], [1], [0, 0, 1, 1], [], []>} : vector<2x32xbf16>, vector<32x128xbf16>, vector<2x128xf32> -> vector<2x128xf32>
    %249 = arith.addf %246, %248 : vector<2x128xf32>
    %250 = arith.addf %249, %10 : vector<2x128xf32>
    %251 = vector.extract_strided_slice %250 {offsets = [0, 0], sizes = [2, 32], strides = [1, 1]} : vector<2x128xf32> to vector<2x32xf32>
    %cst_99 = arith.constant 5.000000e-01 : f32
    %252 = vector.broadcast %cst_99 : f32 to vector<2x32xf32>
    %253 = arith.mulf %252, %251 : vector<2x32xf32>
    %254 = math.tanh %253 : vector<2x32xf32>
    %cst_100 = arith.constant 5.000000e-01 : f32
    %255 = vector.broadcast %cst_100 : f32 to vector<2x32xf32>
    %256 = arith.mulf %255, %254 : vector<2x32xf32>
    %cst_101 = arith.constant 5.000000e-01 : f32
    %257 = vector.broadcast %cst_101 : f32 to vector<2x32xf32>
    %258 = arith.addf %256, %257 : vector<2x32xf32>
    %259 = vector.extract_strided_slice %250 {offsets = [0, 32], sizes = [2, 32], strides = [1, 1]} : vector<2x128xf32> to vector<2x32xf32>
    %cst_102 = arith.constant 5.000000e-01 : f32
    %260 = vector.broadcast %cst_102 : f32 to vector<2x32xf32>
    %261 = arith.mulf %260, %259 : vector<2x32xf32>
    %262 = math.tanh %261 : vector<2x32xf32>
    %cst_103 = arith.constant 5.000000e-01 : f32
    %263 = vector.broadcast %cst_103 : f32 to vector<2x32xf32>
    %264 = arith.mulf %263, %262 : vector<2x32xf32>
    %cst_104 = arith.constant 5.000000e-01 : f32
    %265 = vector.broadcast %cst_104 : f32 to vector<2x32xf32>
    %266 = arith.addf %264, %265 : vector<2x32xf32>
    %267 = vector.extract_strided_slice %250 {offsets = [0, 64], sizes = [2, 32], strides = [1, 1]} : vector<2x128xf32> to vector<2x32xf32>
    %268 = math.tanh %267 : vector<2x32xf32>
    %269 = vector.extract_strided_slice %250 {offsets = [0, 96], sizes = [2, 32], strides = [1, 1]} : vector<2x128xf32> to vector<2x32xf32>
    %cst_105 = arith.constant 5.000000e-01 : f32
    %270 = vector.broadcast %cst_105 : f32 to vector<2x32xf32>
    %271 = arith.mulf %270, %269 : vector<2x32xf32>
    %272 = math.tanh %271 : vector<2x32xf32>
    %cst_106 = arith.constant 5.000000e-01 : f32
    %273 = vector.broadcast %cst_106 : f32 to vector<2x32xf32>
    %274 = arith.mulf %273, %272 : vector<2x32xf32>
    %cst_107 = arith.constant 5.000000e-01 : f32
    %275 = vector.broadcast %cst_107 : f32 to vector<2x32xf32>
    %276 = arith.addf %274, %275 : vector<2x32xf32>
    %277 = arith.mulf %266, %234 : vector<2x32xf32>
    %278 = arith.mulf %258, %268 : vector<2x32xf32>
    %279 = arith.addf %277, %278 : vector<2x32xf32>
    %280 = math.tanh %279 : vector<2x32xf32>
    %281 = arith.mulf %276, %280 : vector<2x32xf32>
    %c0_108 = arith.constant 0 : index
    %282 = arith.index_cast %242 : i32 to index
    %c0_109 = arith.constant 0 : index
    %c0_110 = arith.constant 0 : index
    %283 = vector.load %arg6[%c0_108, %282, %c0_109, %c0_110] : memref<1x8x2x32xf32, #tpu.memory_space<vmem>>, vector<1x1x2x32xf32>
    %284 = vector.shape_cast %283 : vector<1x1x2x32xf32> to vector<2x32xf32>
    %285 = vector.shape_cast %281 : vector<2x32xf32> to vector<1x1x2x32xf32>
    tpu.vector_store %arg6[%c0_108, %282, %c0_109, %c0_110], %285 {strides = array<i32>} : memref<1x8x2x32xf32, #tpu.memory_space<vmem>>, vector<1x1x2x32xf32>,
    %c6_i32 = arith.constant 6 : i32
    %286 = arith.muli %13, %c6_i32 : i32
    %287 = arith.addi %11, %286 : i32
    %288 = arith.index_cast %287 : i32 to index
    %c0_111 = arith.constant 0 : index
    %c0_112 = arith.constant 0 : index
    %289 = vector.load %arg2[%288, %c0_111, %c0_112] : memref<8x2x16xbf16, #tpu.memory_space<vmem>>, vector<1x2x16xbf16>
    %290 = vector.shape_cast %289 : vector<1x2x16xbf16> to vector<2x16xbf16>
    %cst_113 = arith.constant dense<0.000000e+00> : vector<2x128xf32>
    %291 = tpu.matmul %290, %4, %cst_113 {dimension_numbers = #tpu.dot_dimension_numbers<[1], [0], [0], [1], [0, 0, 1, 1], [], []>} : vector<2x16xbf16>, vector<16x128xbf16>, vector<2x128xf32> -> vector<2x128xf32>
    %292 = arith.truncf %281 : vector<2x32xf32> to vector<2x32xbf16>
    %cst_114 = arith.constant dense<0.000000e+00> : vector<2x128xf32>
    %293 = tpu.matmul %292, %6, %cst_114 {dimension_numbers = #tpu.dot_dimension_numbers<[1], [0], [0], [1], [0, 0, 1, 1], [], []>} : vector<2x32xbf16>, vector<32x128xbf16>, vector<2x128xf32> -> vector<2x128xf32>
    %294 = arith.addf %291, %293 : vector<2x128xf32>
    %295 = arith.addf %294, %10 : vector<2x128xf32>
    %296 = vector.extract_strided_slice %295 {offsets = [0, 0], sizes = [2, 32], strides = [1, 1]} : vector<2x128xf32> to vector<2x32xf32>
    %cst_115 = arith.constant 5.000000e-01 : f32
    %297 = vector.broadcast %cst_115 : f32 to vector<2x32xf32>
    %298 = arith.mulf %297, %296 : vector<2x32xf32>
    %299 = math.tanh %298 : vector<2x32xf32>
    %cst_116 = arith.constant 5.000000e-01 : f32
    %300 = vector.broadcast %cst_116 : f32 to vector<2x32xf32>
    %301 = arith.mulf %300, %299 : vector<2x32xf32>
    %cst_117 = arith.constant 5.000000e-01 : f32
    %302 = vector.broadcast %cst_117 : f32 to vector<2x32xf32>
    %303 = arith.addf %301, %302 : vector<2x32xf32>
    %304 = vector.extract_strided_slice %295 {offsets = [0, 32], sizes = [2, 32], strides = [1, 1]} : vector<2x128xf32> to vector<2x32xf32>
    %cst_118 = arith.constant 5.000000e-01 : f32
    %305 = vector.broadcast %cst_118 : f32 to vector<2x32xf32>
    %306 = arith.mulf %305, %304 : vector<2x32xf32>
    %307 = math.tanh %306 : vector<2x32xf32>
    %cst_119 = arith.constant 5.000000e-01 : f32
    %308 = vector.broadcast %cst_119 : f32 to vector<2x32xf32>
    %309 = arith.mulf %308, %307 : vector<2x32xf32>
    %cst_120 = arith.constant 5.000000e-01 : f32
    %310 = vector.broadcast %cst_120 : f32 to vector<2x32xf32>
    %311 = arith.addf %309, %310 : vector<2x32xf32>
    %312 = vector.extract_strided_slice %295 {offsets = [0, 64], sizes = [2, 32], strides = [1, 1]} : vector<2x128xf32> to vector<2x32xf32>
    %313 = math.tanh %312 : vector<2x32xf32>
    %314 = vector.extract_strided_slice %295 {offsets = [0, 96], sizes = [2, 32], strides = [1, 1]} : vector<2x128xf32> to vector<2x32xf32>
    %cst_121 = arith.constant 5.000000e-01 : f32
    %315 = vector.broadcast %cst_121 : f32 to vector<2x32xf32>
    %316 = arith.mulf %315, %314 : vector<2x32xf32>
    %317 = math.tanh %316 : vector<2x32xf32>
    %cst_122 = arith.constant 5.000000e-01 : f32
    %318 = vector.broadcast %cst_122 : f32 to vector<2x32xf32>
    %319 = arith.mulf %318, %317 : vector<2x32xf32>
    %cst_123 = arith.constant 5.000000e-01 : f32
    %320 = vector.broadcast %cst_123 : f32 to vector<2x32xf32>
    %321 = arith.addf %319, %320 : vector<2x32xf32>
    %322 = arith.mulf %311, %279 : vector<2x32xf32>
    %323 = arith.mulf %303, %313 : vector<2x32xf32>
    %324 = arith.addf %322, %323 : vector<2x32xf32>
    %325 = math.tanh %324 : vector<2x32xf32>
    %326 = arith.mulf %321, %325 : vector<2x32xf32>
    %c0_124 = arith.constant 0 : index
    %327 = arith.index_cast %287 : i32 to index
    %c0_125 = arith.constant 0 : index
    %c0_126 = arith.constant 0 : index
    %328 = vector.load %arg6[%c0_124, %327, %c0_125, %c0_126] : memref<1x8x2x32xf32, #tpu.memory_space<vmem>>, vector<1x1x2x32xf32>
    %329 = vector.shape_cast %328 : vector<1x1x2x32xf32> to vector<2x32xf32>
    %330 = vector.shape_cast %326 : vector<2x32xf32> to vector<1x1x2x32xf32>
    tpu.vector_store %arg6[%c0_124, %327, %c0_125, %c0_126], %330 {strides = array<i32>} : memref<1x8x2x32xf32, #tpu.memory_space<vmem>>, vector<1x1x2x32xf32>,
    %c7_i32_127 = arith.constant 7 : i32
    %331 = arith.muli %13, %c7_i32_127 : i32
    %332 = arith.addi %11, %331 : i32
    %333 = arith.index_cast %332 : i32 to index
    %c0_128 = arith.constant 0 : index
    %c0_129 = arith.constant 0 : index
    %334 = vector.load %arg2[%333, %c0_128, %c0_129] : memref<8x2x16xbf16, #tpu.memory_space<vmem>>, vector<1x2x16xbf16>
    %335 = vector.shape_cast %334 : vector<1x2x16xbf16> to vector<2x16xbf16>
    %cst_130 = arith.constant dense<0.000000e+00> : vector<2x128xf32>
    %336 = tpu.matmul %335, %4, %cst_130 {dimension_numbers = #tpu.dot_dimension_numbers<[1], [0], [0], [1], [0, 0, 1, 1], [], []>} : vector<2x16xbf16>, vector<16x128xbf16>, vector<2x128xf32> -> vector<2x128xf32>
    %337 = arith.truncf %326 : vector<2x32xf32> to vector<2x32xbf16>
    %cst_131 = arith.constant dense<0.000000e+00> : vector<2x128xf32>
    %338 = tpu.matmul %337, %6, %cst_131 {dimension_numbers = #tpu.dot_dimension_numbers<[1], [0], [0], [1], [0, 0, 1, 1], [], []>} : vector<2x32xbf16>, vector<32x128xbf16>, vector<2x128xf32> -> vector<2x128xf32>
    %339 = arith.addf %336, %338 : vector<2x128xf32>
    %340 = arith.addf %339, %10 : vector<2x128xf32>
    %341 = vector.extract_strided_slice %340 {offsets = [0, 0], sizes = [2, 32], strides = [1, 1]} : vector<2x128xf32> to vector<2x32xf32>
    %cst_132 = arith.constant 5.000000e-01 : f32
    %342 = vector.broadcast %cst_132 : f32 to vector<2x32xf32>
    %343 = arith.mulf %342, %341 : vector<2x32xf32>
    %344 = math.tanh %343 : vector<2x32xf32>
    %cst_133 = arith.constant 5.000000e-01 : f32
    %345 = vector.broadcast %cst_133 : f32 to vector<2x32xf32>
    %346 = arith.mulf %345, %344 : vector<2x32xf32>
    %cst_134 = arith.constant 5.000000e-01 : f32
    %347 = vector.broadcast %cst_134 : f32 to vector<2x32xf32>
    %348 = arith.addf %346, %347 : vector<2x32xf32>
    %349 = vector.extract_strided_slice %340 {offsets = [0, 32], sizes = [2, 32], strides = [1, 1]} : vector<2x128xf32> to vector<2x32xf32>
    %cst_135 = arith.constant 5.000000e-01 : f32
    %350 = vector.broadcast %cst_135 : f32 to vector<2x32xf32>
    %351 = arith.mulf %350, %349 : vector<2x32xf32>
    %352 = math.tanh %351 : vector<2x32xf32>
    %cst_136 = arith.constant 5.000000e-01 : f32
    %353 = vector.broadcast %cst_136 : f32 to vector<2x32xf32>
    %354 = arith.mulf %353, %352 : vector<2x32xf32>
    %cst_137 = arith.constant 5.000000e-01 : f32
    %355 = vector.broadcast %cst_137 : f32 to vector<2x32xf32>
    %356 = arith.addf %354, %355 : vector<2x32xf32>
    %357 = vector.extract_strided_slice %340 {offsets = [0, 64], sizes = [2, 32], strides = [1, 1]} : vector<2x128xf32> to vector<2x32xf32>
    %358 = math.tanh %357 : vector<2x32xf32>
    %359 = vector.extract_strided_slice %340 {offsets = [0, 96], sizes = [2, 32], strides = [1, 1]} : vector<2x128xf32> to vector<2x32xf32>
    %cst_138 = arith.constant 5.000000e-01 : f32
    %360 = vector.broadcast %cst_138 : f32 to vector<2x32xf32>
    %361 = arith.mulf %360, %359 : vector<2x32xf32>
    %362 = math.tanh %361 : vector<2x32xf32>
    %cst_139 = arith.constant 5.000000e-01 : f32
    %363 = vector.broadcast %cst_139 : f32 to vector<2x32xf32>
    %364 = arith.mulf %363, %362 : vector<2x32xf32>
    %cst_140 = arith.constant 5.000000e-01 : f32
    %365 = vector.broadcast %cst_140 : f32 to vector<2x32xf32>
    %366 = arith.addf %364, %365 : vector<2x32xf32>
    %367 = arith.mulf %356, %324 : vector<2x32xf32>
    %368 = arith.mulf %348, %358 : vector<2x32xf32>
    %369 = arith.addf %367, %368 : vector<2x32xf32>
    %370 = math.tanh %369 : vector<2x32xf32>
    %371 = arith.mulf %366, %370 : vector<2x32xf32>
    %c0_141 = arith.constant 0 : index
    %372 = arith.index_cast %332 : i32 to index
    %c0_142 = arith.constant 0 : index
    %c0_143 = arith.constant 0 : index
    %373 = vector.load %arg6[%c0_141, %372, %c0_142, %c0_143] : memref<1x8x2x32xf32, #tpu.memory_space<vmem>>, vector<1x1x2x32xf32>
    %374 = vector.shape_cast %373 : vector<1x1x2x32xf32> to vector<2x32xf32>
    %375 = vector.shape_cast %371 : vector<2x32xf32> to vector<1x1x2x32xf32>
    tpu.vector_store %arg6[%c0_141, %372, %c0_142, %c0_143], %375 {strides = array<i32>} : memref<1x8x2x32xf32, #tpu.memory_space<vmem>>, vector<1x1x2x32xf32>,
    %c8_i32 = arith.constant 8 : i32
    %c0_144 = arith.constant 0 : index
    %c0_145 = arith.constant 0 : index
    %376 = vector.load %arg8[%c0_144, %c0_145] : memref<2x32xf32, #tpu.memory_space<vmem>>, vector<2x32xf32>
    tpu.vector_store %arg8[%c0_144, %c0_145], %371 {strides = array<i32>} : memref<2x32xf32, #tpu.memory_space<vmem>>, vector<2x32xf32>,
    %c0_146 = arith.constant 0 : index
    %c0_147 = arith.constant 0 : index
    %377 = vector.load %arg9[%c0_146, %c0_147] : memref<2x32xf32, #tpu.memory_space<vmem>>, vector<2x32xf32>
    tpu.vector_store %arg9[%c0_146, %c0_147], %369 {strides = array<i32>} : memref<2x32xf32, #tpu.memory_space<vmem>>, vector<2x32xf32>,
    %c0_i32_148 = arith.constant 0 : i32
    %378 = arith.cmpi eq, %arg1, %c0_i32_148 : i32
    %379 = arith.extui %378 : i1 to i32
    %c0_i32_149 = arith.constant 0 : i32
    %380 = arith.cmpi ne, %379, %c0_i32_149 : i32
    scf.if %380 {
      %c0_150 = arith.constant 0 : index
      %c0_151 = arith.constant 0 : index
      %c0_152 = arith.constant 0 : index
      %381 = vector.load %arg7[%c0_150, %c0_151, %c0_152] : memref<1x2x32xf32, #tpu.memory_space<vmem>>, vector<1x2x32xf32>
      %382 = vector.shape_cast %381 : vector<1x2x32xf32> to vector<2x32xf32>
      %383 = vector.shape_cast %369 : vector<2x32xf32> to vector<1x2x32xf32>
      tpu.vector_store %arg7[%c0_150, %c0_151, %c0_152], %383 {strides = array<i32>} : memref<1x2x32xf32, #tpu.memory_space<vmem>>, vector<1x2x32xf32>,
    } else {
    }
    return
  }
  func.func @transform_0(%arg0: i32, %arg1: i32) -> (i32, i32, i32) {
    %c2_i32 = arith.constant 2 : i32
    %0 = arith.muli %c2_i32, %arg1 : i32
    %c0_i32 = arith.constant 0 : i32
    %1 = arith.subi %c0_i32, %0 : i32
    %2 = arith.muli %arg0, %1 : i32
    %3 = arith.addi %arg1, %2 : i32
    %c0_i32_0 = arith.constant 0 : i32
    %c0_i32_1 = arith.constant 0 : i32
    %c0_i32_2 = arith.constant 0 : i32
    return %3, %c0_i32_0, %c0_i32_1 : i32, i32, i32
  }
  func.func @transform_1(%arg0: i32, %arg1: i32) -> (i32, i32, i32) {
    %c0_i32 = arith.constant 0 : i32
    %c0_i32_0 = arith.constant 0 : i32
    %c0_i32_1 = arith.constant 0 : i32
    return %arg0, %c0_i32, %c0_i32_0 : i32, i32, i32
  }
  func.func @transform_2(%arg0: i32, %arg1: i32) -> (i32, i32, i32) {
    %c0_i32 = arith.constant 0 : i32
    %c0_i32_0 = arith.constant 0 : i32
    %c0_i32_1 = arith.constant 0 : i32
    return %arg0, %c0_i32, %c0_i32_0 : i32, i32, i32
  }
  func.func @transform_3(%arg0: i32, %arg1: i32) -> (i32, i32, i32) {
    %c0_i32 = arith.constant 0 : i32
    %c0_i32_0 = arith.constant 0 : i32
    %c0_i32_1 = arith.constant 0 : i32
    return %arg0, %c0_i32, %c0_i32_0 : i32, i32, i32
  }
  func.func @transform_4(%arg0: i32, %arg1: i32) -> (i32, i32, i32, i32) {
    %c2_i32 = arith.constant 2 : i32
    %0 = arith.muli %c2_i32, %arg1 : i32
    %c0_i32 = arith.constant 0 : i32
    %1 = arith.subi %c0_i32, %0 : i32
    %2 = arith.muli %arg0, %1 : i32
    %3 = arith.addi %arg1, %2 : i32
    %c0_i32_0 = arith.constant 0 : i32
    %c0_i32_1 = arith.constant 0 : i32
    %c0_i32_2 = arith.constant 0 : i32
    return %arg0, %3, %c0_i32_0, %c0_i32_1 : i32, i32, i32, i32
  }
  func.func @transform_5(%arg0: i32, %arg1: i32) -> (i32, i32, i32) {
    %c0_i32 = arith.constant 0 : i32
    %c0_i32_0 = arith.constant 0 : i32
    %c0_i32_1 = arith.constant 0 : i32
    return %arg0, %c0_i32, %c0_i32_0 : i32, i32, i32
  }
}

</mosaic_0001>

<llo_original>
// kernel: tpu_custom_call.1
$region0: #{tpu_custom_call.1}
  #allocation0 [shape = 'u32[]', space=smem, size = 0x4, offset = 0x4, fixed_abs, tag = 'smem constant byte address 0x4 - core index']
  #allocation1 [shape = 'u32[72,128]{1,0:T(1,128)}', space=vmem, size = 0x9000, scoped, tag = 'internal scratch']
  #allocation2 [shape = 'f32[2,32]{1,0:T(2,128)}', space=vmem, size = 0x400, scoped, tag = 'scratch operand']
  #allocation3 [shape = 'f32[2,32]{1,0:T(2,128)}', space=vmem, size = 0x400, scoped, tag = 'scratch operand']
  %s0 = inlined_call_operand.hbm [shape: bf16[8,2,16], index: 0, kind: input, shape index: {}]
  %s1 = inlined_call_operand.hbm [shape: bf16[2,16,128], index: 1, kind: input, shape index: {}]
  %s2 = inlined_call_operand.hbm [shape: bf16[2,32,128], index: 2, kind: input, shape index: {}]
  %s3 = inlined_call_operand.vmem [shape: f32[2,1,128], index: 3, kind: input, shape index: {}]
  %s4 = inlined_call_operand.hbm [shape: f32[2,8,2,32], index: 4, kind: output, shape index: {0}]
  %s5 = inlined_call_operand.hbm [shape: f32[2,2,32], index: 5, kind: output, shape index: {1}]
  %6 = xla_tuple %s4, %s5
  %s7 = sld [smem:[#allocation0]]
  $region77: #{tpu_custom_call.1} parent=0
    _
  %s9 = ssub.s32 1, %s7
  %s10 = scalar_select 0, %s9, %s7
  $region1: #{tpu_custom_call.1} parent=0
    #allocation4 [shape = 'u8[8192]{0}', space=vmem, size = 0x2000, scoped, tag = 'input window, operand 0']
    #allocation5 [shape = 's32[2]{0}', space=sflag, size = 0x8, scoped, tag = 'scoped memory for tpu_custom_call.1']
    #allocation6 [shape = 's32[2]{0}', space=sflag, size = 0x8, scoped, tag = 'scoped memory for tpu_custom_call.1']
    #allocation7 [shape = 'u8[8192]{0}', space=vmem, size = 0x2000, scoped, tag = 'input window, operand 1']
    #allocation8 [shape = 's32[2]{0}', space=sflag, size = 0x8, scoped, tag = 'scoped memory for tpu_custom_call.1']
    #allocation9 [shape = 'u8[16384]{0}', space=vmem, size = 0x4000, scoped, tag = 'input window, operand 2']
    #allocation10 [shape = 'u8[16384]{0}', space=vmem, size = 0x4000, scoped, tag = 'output window, operand 0']
    #allocation11 [shape = 'u8[2048]{0}', space=vmem, size = 0x800, scoped, tag = 'output window, operand 1']
    #allocation12 [shape = 's32[2]{0}', space=sflag, size = 0x8, scoped, tag = 'scoped memory for tpu_custom_call.1']
    %11 = vsyncpa [#allocation5], 0
    %s12 = scalar_lea.sflag [#allocation5], 1
    %13 = vsyncpa %s12, 0
    %14 = vsyncpa [#allocation8], 0
    %s15 = scalar_lea.sflag [#allocation8], 1
    %16 = vsyncpa %s15, 0
    %17 = vsyncpa [#allocation6], 0
    %s18 = scalar_lea.sflag [#allocation6], 1
    %19 = vsyncpa %s18, 0
    %20 = vsyncpa [#allocation12], 0
    %s21 = scalar_lea.sflag [#allocation12], 1
    %22 = vsyncpa %s21, 0
    loop: start=0, step=1, limit=4
    $region2: #{tpu_custom_call.1} parent=1 // loop_pre_header
      _
    $region3: #{tpu_custom_call.1} parent=1 // loop_header
      %s24 = sphi 0, %s28
      %p25 = scmp.ge.s32.totalorder %s24, 4
      %s31 = sphi 0, %s43
      %s32 = sphi 0, %s39
      %s33 = sphi 0, %s31
      %s34 = sphi 0, %s32
      %s35 = sphi 0, %s33
      %s36 = sphi 0, %s34
      %s54 = sphi 0, %s56
      %s57 = sphi 0, %s54
      %s58 = sphi 0, %s57
      %s74 = sphi 0, %s58
      %s80 = sphi 0, %s82
      %s83 = sphi 0, %s80
      %s84 = sphi 0, %s83
      %s100 = sphi 0, %s84
      %s106 = sphi 0, %s108
      %s109 = sphi 0, %s106
      %s110 = sphi 0, %s109
      %s126 = sphi 0, %s110
      %s132 = sphi 0, %s134
      %s135 = sphi 0, %s132
      %s136 = sphi 0, %s135
      %s152 = sphi 0, %s136
      %s168 = sphi 0, %s170
      %s171 = sphi 0, %s168
      %s172 = sphi 0, %s171
      %s188 = sphi 0, %s172
      %s194 = sphi 0, %s196
      %s197 = sphi 0, %s194
      %s198 = sphi 0, %s197
      %s214 = sphi 0, %s198
    $region4: #{tpu_custom_call.1} parent=1 // loop_header_branch
      %27 = sbr.rel (%p25) target = $region8
    $region5: #{tpu_custom_call.1} parent=1 // loop_body
      %s29 = ssub.s32 %s24, 1
      %s30 = ssub.s32 %s24, 2
      %s37 = sadd.s32 1, %s32
      %p38 = scmp.ge.s32.totalorder %s37, 1
      %s39 = scalar_select %p38, 0, %s37
      %s40 = sadd.s32 1, %s31
      %s41 = scalar_select %p38, %s40, %s31
      %p42 = scmp.ge.s32.totalorder %s41, 2
      %s43 = scalar_select %p42, 0, %s41
      %s44 = smul.u32 %s32, 2
      %s45 = ssub.s32 0, %s44
      %s46 = smul.u32 %s31, %s45
      %s47 = sadd.s32 %s32, %s46
      %s48 = smul.u32 %s39, 2
      %s49 = ssub.s32 0, %s48
      %s50 = smul.u32 %s43, %s49
      %s51 = sadd.s32 %s39, %s50
      %s52 = ssub.s32 %s47, %s51
      %p53 = scmp.eq.s32.totalorder %s52, 0
      %s55 = sadd.s32 %s54, 1
      %s56 = scalar_select %p53, %s54, %s55
      %p59 = pneg %p53
      %p60 = scmp.eq.s32.totalorder %s24, 1
      %p61 = por %p59, %p60
      %p62 = scmp.ne.s32.totalorder %s54, %s57
      %p63 = scmp.eq.s32.totalorder %s24, 0
      %p64 = por %p62, %p63
      %p65 = scmp.ne.s32.totalorder %s54, %s57
      %p66 = scmp.eq.s32.totalorder %s29, 1
      %p67 = por %p65, %p66
      %p68 = scmp.ne.s32.totalorder %s57, %s58
      %p69 = scmp.eq.s32.totalorder %s29, 0
      %p70 = por %p68, %p69
      %p71 = scmp.ne.s32.totalorder %s57, %s58
      %p72 = scmp.eq.s32.totalorder %s30, 1
      %p73 = por %p71, %p72
      %p75 = scmp.ne.s32.totalorder %s58, %s74
      %p76 = scmp.eq.s32.totalorder %s30, 0
      %p77 = por %p75, %p76
      %s78 = ssub.s32 %s31, %s43
      %p79 = scmp.eq.s32.totalorder %s78, 0
      %s81 = sadd.s32 %s80, 1
      %s82 = scalar_select %p79, %s80, %s81
      %p85 = pneg %p79
      %p86 = scmp.eq.s32.totalorder %s24, 1
      %p87 = por %p85, %p86
      %p88 = scmp.ne.s32.totalorder %s80, %s83
      %p89 = scmp.eq.s32.totalorder %s24, 0
      %p90 = por %p88, %p89
      %p91 = scmp.ne.s32.totalorder %s80, %s83
      %p92 = scmp.eq.s32.totalorder %s29, 1
      %p93 = por %p91, %p92
      %p94 = scmp.ne.s32.totalorder %s83, %s84
      %p95 = scmp.eq.s32.totalorder %s29, 0
      %p96 = por %p94, %p95
      %p97 = scmp.ne.s32.totalorder %s83, %s84
      %p98 = scmp.eq.s32.totalorder %s30, 1
      %p99 = por %p97, %p98
      %p101 = scmp.ne.s32.totalorder %s84, %s100
      %p102 = scmp.eq.s32.totalorder %s30, 0
      %p103 = por %p101, %p102
      %s104 = ssub.s32 %s31, %s43
      %p105 = scmp.eq.s32.totalorder %s104, 0
      %s107 = sadd.s32 %s106, 1
      %s108 = scalar_select %p105, %s106, %s107
      %p111 = pneg %p105
      %p112 = scmp.eq.s32.totalorder %s24, 1
      %p113 = por %p111, %p112
      %p114 = scmp.ne.s32.totalorder %s106, %s109
      %p115 = scmp.eq.s32.totalorder %s24, 0
      %p116 = por %p114, %p115
      %p117 = scmp.ne.s32.totalorder %s106, %s109
      %p118 = scmp.eq.s32.totalorder %s29, 1
      %p119 = por %p117, %p118
      %p120 = scmp.ne.s32.totalorder %s109, %s110
      %p121 = scmp.eq.s32.totalorder %s29, 0
      %p122 = por %p120, %p121
      %p123 = scmp.ne.s32.totalorder %s109, %s110
      %p124 = scmp.eq.s32.totalorder %s30, 1
      %p125 = por %p123, %p124
      %p127 = scmp.ne.s32.totalorder %s110, %s126
      %p128 = scmp.eq.s32.totalorder %s30, 0
      %p129 = por %p127, %p128
      %s130 = ssub.s32 %s31, %s43
      %p131 = scmp.eq.s32.totalorder %s130, 0
      %s133 = sadd.s32 %s132, 1
      %s134 = scalar_select %p131, %s132, %s133
      %p137 = pneg %p131
      %p138 = scmp.eq.s32.totalorder %s24, 1
      %p139 = por %p137, %p138
      %p140 = scmp.ne.s32.totalorder %s132, %s135
      %p141 = scmp.eq.s32.totalorder %s24, 0
      %p142 = por %p140, %p141
      %p143 = scmp.ne.s32.totalorder %s132, %s135
      %p144 = scmp.eq.s32.totalorder %s29, 1
      %p145 = por %p143, %p144
      %p146 = scmp.ne.s32.totalorder %s135, %s136
      %p147 = scmp.eq.s32.totalorder %s29, 0
      %p148 = por %p146, %p147
      %p149 = scmp.ne.s32.totalorder %s135, %s136
      %p150 = scmp.eq.s32.totalorder %s30, 1
      %p151 = por %p149, %p150
      %p153 = scmp.ne.s32.totalorder %s136, %s152
      %p154 = scmp.eq.s32.totalorder %s30, 0
      %p155 = por %p153, %p154
      %s156 = smul.u32 %s32, 2
      %s157 = ssub.s32 0, %s156
      %s158 = smul.u32 %s31, %s157
      %s159 = sadd.s32 %s32, %s158
      %s160 = smul.u32 %s39, 2
      %s161 = ssub.s32 0, %s160
      %s162 = smul.u32 %s43, %s161
      %s163 = sadd.s32 %s39, %s162
      %s164 = ssub.s32 %s31, %s43
      %s165 = ssub.s32 %s159, %s163
      %s166 = sor.u32 %s164, %s165
      %p167 = scmp.eq.s32.totalorder %s166, 0
      %s169 = sadd.s32 %s168, 1
      %s170 = scalar_select %p167, %s168, %s169
      %p173 = pneg %p167
      %p174 = scmp.eq.s32.totalorder %s24, 1
      %p175 = por %p173, %p174
      %p176 = scmp.ne.s32.totalorder %s168, %s171
      %p177 = scmp.eq.s32.totalorder %s24, 0
      %p178 = por %p176, %p177
      %p179 = scmp.ne.s32.totalorder %s168, %s171
      %p180 = scmp.eq.s32.totalorder %s29, 1
      %p181 = por %p179, %p180
      %p182 = scmp.ne.s32.totalorder %s171, %s172
      %p183 = scmp.eq.s32.totalorder %s29, 0
      %p184 = por %p182, %p183
      %p185 = scmp.ne.s32.totalorder %s171, %s172
      %p186 = scmp.eq.s32.totalorder %s30, 1
      %p187 = por %p185, %p186
      %p189 = scmp.ne.s32.totalorder %s172, %s188
      %p190 = scmp.eq.s32.totalorder %s30, 0
      %p191 = por %p189, %p190
      %s192 = ssub.s32 %s31, %s43
      %p193 = scmp.eq.s32.totalorder %s192, 0
      %s195 = sadd.s32 %s194, 1
      %s196 = scalar_select %p193, %s194, %s195
      %p199 = pneg %p193
      %p200 = scmp.eq.s32.totalorder %s24, 1
      %p201 = por %p199, %p200
      %p202 = scmp.ne.s32.totalorder %s194, %s197
      %p203 = scmp.eq.s32.totalorder %s24, 0
      %p204 = por %p202, %p203
      %p205 = scmp.ne.s32.totalorder %s194, %s197
      %p206 = scmp.eq.s32.totalorder %s29, 1
      %p207 = por %p205, %p206
      %p208 = scmp.ne.s32.totalorder %s197, %s198
      %p209 = scmp.eq.s32.totalorder %s29, 0
      %p210 = por %p208, %p209
      %p211 = scmp.ne.s32.totalorder %s197, %s198
      %p212 = scmp.eq.s32.totalorder %s30, 1
      %p213 = por %p211, %p212
      %p215 = scmp.ne.s32.totalorder %s198, %s214
      %p216 = scmp.eq.s32.totalorder %s30, 0
      %p217 = por %p215, %p216
      %p218 = scmp.le.s32.totalorder 1, %s24
      %p219 = scmp.lt.s32.totalorder %s24, 3
      %p220 = pnand %p218, %p219
      %p221 = pneg %p220
      // Predicated region
      $region9: #{tpu_custom_call.1} parent=5 // pred_check
        _
      $region10: #{tpu_custom_call.1} parent=5 // pred_check_branch
        %223 = sbr.rel (%p220) target = $region12
      $region11: #{tpu_custom_call.1} parent=5 // pred_region
        %s224 = ssub.s32 %s24, 1
      $region12: #{tpu_custom_call.1} parent=5 // pred_fallthru
        _
      %p225 = scmp.lt.s32.totalorder %s24, 2
      // Predicated region
      $region13: #{tpu_custom_call.1} parent=5 // pred_check
        %p226 = pneg %p225
      $region14: #{tpu_custom_call.1} parent=5 // pred_check_branch
        %228 = sbr.rel (%p226) target = $region16
      $region15: #{tpu_custom_call.1} parent=5 // pred_region
        // Predicated region
        $region17: #{tpu_custom_call.1} parent=15 // pred_check
          %p229 = pneg %p64
        $region18: #{tpu_custom_call.1} parent=15 // pred_check_branch
          %231 = sbr.rel (%p229) target = $region20
        $region19: #{tpu_custom_call.1} parent=15 // pred_region
          %s232 = sand.u32 %s54, 1
          %s233 = scalar_lea.sflag [#allocation5], %s232
          %s234 = sand.u32 %s54, 1
          %s235 = smul.addr %s234, 8
          %s236 = scalar_lea.vmem [#allocation4], %s235
          %s237 = smul.u32 %s32, 2
          %s238 = ssub.s32 0, %s237
          %s239 = smul.u32 %s31, %s238
          %s240 = sadd.s32 %s32, %s239
          %s241 = smul.u32 8, %s240
          %243 = vsyncadd %s233, 0
          %s244 = scalar_lea.hbm %s0, %s241
          %s245 = sshll.u32 %s244, 4
          %s246 = int_to_ptr.hbm [resolvable:$true] %s245
          %s247 = sshll.u32 %s236, 4
          %s248 = int_to_ptr.vmem [resolvable:$true] %s247
          %253 = dma.hbm_to_vmem [thread:$0]  %s246, 128, %s248, %s233, 16, 16, 1
        $region20: #{tpu_custom_call.1} parent=15 // pred_fallthru
          _
        // Predicated region
        $region21: #{tpu_custom_call.1} parent=15 // pred_check
          %p254 = pneg %p90
        $region22: #{tpu_custom_call.1} parent=15 // pred_check_branch
          %256 = sbr.rel (%p254) target = $region24
        $region23: #{tpu_custom_call.1} parent=15 // pred_region
          %s257 = sand.u32 %s24, 1
          %s258 = scalar_lea.sflag [#allocation8], %s257
          %s259 = sand.u32 %s80, 1
          %s260 = smul.addr %s259, 8
          %s261 = scalar_lea.vmem [#allocation7], %s260
          %263 = vsyncadd %s258, 0
          %s264 = smul.addr %s31, 2
          %s265 = smul.addr %s264, 4
          %s266 = scalar_lea.hbm %s1, %s265
          %s267 = sshll.u32 %s266, 4
          %s268 = int_to_ptr.hbm [resolvable:$true] %s267
          %s269 = sshll.u32 %s261, 4
          %s270 = int_to_ptr.vmem [resolvable:$true] %s269
          %275 = dma.hbm_to_vmem [thread:$0]  %s268, 128, %s270, %s258, 64, 64, 4
        $region24: #{tpu_custom_call.1} parent=15 // pred_fallthru
          _
        // Predicated region
        $region25: #{tpu_custom_call.1} parent=15 // pred_check
          %p276 = pneg %p116
        $region26: #{tpu_custom_call.1} parent=15 // pred_check_branch
          %278 = sbr.rel (%p276) target = $region28
        $region27: #{tpu_custom_call.1} parent=15 // pred_region
          %s279 = sand.u32 %s24, 1
          %s280 = scalar_lea.sflag [#allocation8], %s279
          %s281 = sand.u32 %s106, 1
          %s282 = smul.addr %s281, 16
          %s283 = scalar_lea.vmem [#allocation9], %s282
          %285 = vsyncadd %s280, 0
          %s286 = smul.addr %s31, 4
          %s287 = smul.addr %s286, 4
          %s288 = scalar_lea.hbm %s2, %s287
          %s289 = sshll.u32 %s288, 4
          %s290 = int_to_ptr.hbm [resolvable:$true] %s289
          %s291 = sshll.u32 %s283, 4
          %s292 = int_to_ptr.vmem [resolvable:$true] %s291
          %297 = dma.hbm_to_vmem [thread:$0]  %s290, 256, %s292, %s280, 64, 64, 4
        $region28: #{tpu_custom_call.1} parent=15 // pred_fallthru
          _
        // Predicated region
        $region29: #{tpu_custom_call.1} parent=15 // pred_check
          %p298 = pneg %p142
        $region30: #{tpu_custom_call.1} parent=15 // pred_check_branch
          %300 = sbr.rel (%p298) target = $region32
        $region31: #{tpu_custom_call.1} parent=15 // pred_region
          %p301 = scmp.lt.s32.totalorder %s31, 1
          %s302 = scalar_select %p301, %s31, 1
          %s303 = scalar_lea.vmem %s3, %s302
        $region32: #{tpu_custom_call.1} parent=15 // pred_fallthru
          _
      $region16: #{tpu_custom_call.1} parent=5 // pred_fallthru
        _
      %p304 = scmp.le.s32.totalorder 1, %s24
      %p305 = scmp.lt.s32.totalorder %s24, 3
      %p306 = pnand %p304, %p305
      %p307 = pneg %p306
      // Predicated region
      $region33: #{tpu_custom_call.1} parent=5 // pred_check
        _
      $region34: #{tpu_custom_call.1} parent=5 // pred_check_branch
        %309 = sbr.rel (%p306) target = $region36
      $region35: #{tpu_custom_call.1} parent=5 // pred_region
        %s310 = ssub.s32 %s24, 1
        %s311 = sand.u32 %s57, 1
        %s312 = scalar_lea.sflag [#allocation5], %s311
        %s313 = sand.u32 %s57, 1
        %s314 = smul.addr %s313, 8
        %s315 = scalar_lea.vmem [#allocation4], %s314
        // Predicated region
        $region37: #{tpu_custom_call.1} parent=35 // pred_check
          %p316 = pneg %p70
        $region38: #{tpu_custom_call.1} parent=35 // pred_check_branch
          %318 = sbr.rel (%p316) target = $region40
        $region39: #{tpu_custom_call.1} parent=35 // pred_region
          %320 = dma.done %s312, 128
        $region40: #{tpu_custom_call.1} parent=35 // pred_fallthru
          _
        %s321 = sand.u32 %s29, 1
        %s322 = scalar_lea.sflag [#allocation8], %s321
        %s323 = sand.u32 %s83, 1
        %s324 = smul.addr %s323, 8
        %s325 = scalar_lea.vmem [#allocation7], %s324
        // Predicated region
        $region41: #{tpu_custom_call.1} parent=35 // pred_check
          %p326 = pneg %p96
        $region42: #{tpu_custom_call.1} parent=35 // pred_check_branch
          %328 = sbr.rel (%p326) target = $region44
        $region43: #{tpu_custom_call.1} parent=35 // pred_region
          %330 = dma.done %s322, 128
        $region44: #{tpu_custom_call.1} parent=35 // pred_fallthru
          _
        %s331 = sand.u32 %s29, 1
        %s332 = scalar_lea.sflag [#allocation8], %s331
        %s333 = sand.u32 %s109, 1
        %s334 = smul.addr %s333, 16
        %s335 = scalar_lea.vmem [#allocation9], %s334
        // Predicated region
        $region45: #{tpu_custom_call.1} parent=35 // pred_check
          %p336 = pneg %p122
        $region46: #{tpu_custom_call.1} parent=35 // pred_check_branch
          %338 = sbr.rel (%p336) target = $region48
        $region47: #{tpu_custom_call.1} parent=35 // pred_region
          %340 = dma.done %s332, 256
        $region48: #{tpu_custom_call.1} parent=35 // pred_fallthru
          _
        %s341 = sand.u32 %s57, 1
        %s342 = scalar_lea.sflag [#allocation5], %s341
        %s343 = sand.u32 %s57, 1
        %s344 = smul.addr %s343, 8
        %s345 = scalar_lea.vmem [#allocation4], %s344
        %p346 = pneg %p70
        %p347 = pneg %p67
        %s348 = sand.u32 %s29, 1
        %s349 = scalar_lea.sflag [#allocation8], %s348
        %s350 = sand.u32 %s83, 1
        %s351 = smul.addr %s350, 8
        %s352 = scalar_lea.vmem [#allocation7], %s351
        %p353 = pneg %p96
        %p354 = pneg %p93
        %s355 = sand.u32 %s29, 1
        %s356 = scalar_lea.sflag [#allocation8], %s355
        %s357 = sand.u32 %s109, 1
        %s358 = smul.addr %s357, 16
        %s359 = scalar_lea.vmem [#allocation9], %s358
        %p360 = pneg %p122
        %p361 = pneg %p119
        %p362 = scmp.lt.s32.totalorder %s33, 1
        %s363 = scalar_select %p362, %s33, 1
        %s364 = scalar_lea.vmem %s3, %s363
        %p365 = pneg %p148
        %p366 = pneg %p145
        %p367 = pneg %p184
        %p368 = pneg %p181
        %s369 = sand.u32 %s171, 1
        %s370 = scalar_lea.sflag [#allocation6], %s369
        %s371 = sand.u32 %s171, 1
        %s372 = smul.addr %s371, 16
        %s373 = scalar_lea.vmem [#allocation10], %s372
        %p374 = pneg %p210
        %p375 = pneg %p207
        %s376 = sand.u32 %s197, 1
        %s377 = scalar_lea.sflag [#allocation12], %s376
        %s378 = sand.u32 %s197, 1
        %s379 = smul.addr %s378, 2
        %s380 = scalar_lea.vmem [#allocation11], %s379
        %s381 = smul.u32 %s34, 2
        %s382 = ssub.s32 0, %s381
        %s383 = smul.u32 %s33, %s382
        %s384 = sadd.s32 %s34, %s383
        %s385 = smul.u32 8, %s384
        %p386 = scmp.lt.s32.totalorder %s33, 1
        %s387 = scalar_select %p386, %s33, 1
        %s388 = scalar_lea.vmem %s3, %s387
        %s389 = smul.u32 %s34, 2
        %s390 = ssub.s32 0, %s389
        %s391 = smul.u32 %s33, %s390
        %s392 = sadd.s32 %s34, %s391
        %s393 = smul.u32 8, %s392
        %p395 = scmp.eq.s32.totalorder %s34, 0
        // Predicated region
        $region49: #{tpu_custom_call.1} parent=35 // pred_check
          %p396 = pneg %p395
        $region50: #{tpu_custom_call.1} parent=35 // pred_check_branch
          %398 = sbr.rel (%p396) target = $region52
        $region51: #{tpu_custom_call.1} parent=35 // pred_region
          %vm399 = vcmask 254976
          %400 = vst.msk [vmem:[#allocation2] sm:$0x3] %vm399, 0.0
          %401 = vst.msk [vmem:[#allocation3] sm:$0x3] %vm399, 0.0
        $region52: #{tpu_custom_call.1} parent=35 // pred_fallthru
          _
        %v402 = vld [vmem:[%s325] sm:$0xf]
        %v403 = vld [vmem:[%s325 + $0x4] sm:$0xf]
        %v404 = vld [vmem:[%s335] sm:$0xf]
        %v405 = vld [vmem:[%s335 + $0x4] sm:$0xf]
        %v406 = vld [vmem:[%s335 + $0x8] sm:$0xf]
        %v407 = vld [vmem:[%s335 + $0xc] sm:$0xf]
        %v408 = vld [vmem:[%s388] sm:$0x1]
        %v410 = vperm.slane %v408, 0
        %s412 = smul.u32 %s33, 7
        %s413 = smul.u32 %s33, 2
        %s414 = ssub.s32 1, %s413
        %v415 = vld [vmem:[#allocation2] sm:$0x3]
        %v416 = vld [vmem:[#allocation3] sm:$0x3]
        %s417 = scalar_lea.vmem %s315, %s412 [#allocation4]
        %v418 = vld [vmem:[%s417] sm:$0x1]
        %v419 = vpack.c.bf16 %v415, %v415
        %v424 = vunpack.c.l.b16 %v404
        %v425 = vunpack.c.l.b16 %v405
        %v426 = vunpack.c.l.b16 %v406
        %v427 = vunpack.c.l.b16 %v407
        %v428 = vpack.c.b16 %v425, %v424
        %v429 = vpack.c.b16 %v427, %v426
        %vm432 = vcmask 261120
        %v434 = vsel %vm432, %v419, 0
        %436 = vmatpush.bf16.msra.mxu0 0
        %437 = vmatpush.bf16.msra.mxu0 0
        %438 = vmatpush.bf16.msra.mxu0 0
        %439 = vmatpush.bf16.msra.mxu0 0
        %440 = vmatpush.bf16.msra.mxu0 0
        %441 = vmatpush.bf16.msra.mxu0 0
        %442 = vmatpush.bf16.msra.mxu0 %v429
        %443 = vmatpush.bf16.msra.mxu0 %v428
        %444 = vmatmul.bf16.gmra.mxu0 %v434
        %v445 = vpop.f32.mrf.mxu0
        %v446 = vadd.f32 0.0, %v445
        %v447 = vpop.f32.mrf.mxu0
        %448 = vdwg.mxu0
        %v451 = vunpack.c.l.b16 %v402
        %v452 = vunpack.c.l.b16 %v403
        %v453 = vpack.c.b16 %v452, %v451
        %vm455 = vcmask 130048
        %v457 = vsel %vm455, %v418, 0
        %459 = vmatpush.bf16.msra.mxu0 0
        %460 = vmatpush.bf16.msra.mxu0 0
        %461 = vmatpush.bf16.msra.mxu0 0
        %462 = vmatpush.bf16.msra.mxu0 0
        %463 = vmatpush.bf16.msra.mxu0 0
        %464 = vmatpush.bf16.msra.mxu0 0
        %465 = vmatpush.bf16.msra.mxu0 0
        %466 = vmatpush.bf16.msra.mxu0 %v453
        %467 = vmatmul.bf16.gmra.mxu0 %v457
        %v468 = vpop.f32.mrf.mxu0
        %v469 = vadd.f32 %v446, %v468
        %v470 = vpop.f32.mrf.mxu0
        %471 = vdwg.mxu0
        %v472 = vadd.f32 %v469, %v410
        %v473 = vmul.f32 %v472, 0.5
        %v474 = vtanh.pop %v473
        %v475 = vmul.f32 %v474, 0.5
        %v476 = vadd.f32 %v475, 0.5
        %v477 = vtanh.pop %v472
        %479 = vrot.lane.b32.xlu0 %v416, 32
        %v480 = vpop.permute.xlu0 %479
        %v482 = vmul.f32 %v476, %v480
        %484 = vrot.lane.b32.xlu0 %v477, 64
        %v485 = vpop.permute.xlu0 %484
        %v487 = vmul.f32 %v476, %v485
        %489 = vrot.lane.b32.xlu0 %v487, 32
        %v490 = vpop.permute.xlu0 %489
        %v492 = vadd.f32 %v482, %v490
        %v493 = vtanh.pop %v492
        %495 = vrot.lane.b32.xlu0 %v493, 64
        %v496 = vpop.permute.xlu0 %495
        %v498 = vmul.f32 %v476, %v496
        %500 = vrot.lane.b32.xlu0 %v498, 32
        %v501 = vpop.permute.xlu0 %500
        %s503 = smul.u32 %s412, 2
        %s504 = scalar_lea.vmem %s373, %s503 [#allocation10]
        %vm505 = vcmask 254976
        %506 = vst.msk [vmem:[%s504] sm:$0x3] %vm505, %v501
        %s507 = sadd.s32 %s412, %s414
        %s508 = scalar_lea.vmem %s315, %s507 [#allocation4]
        %v509 = vld [vmem:[%s508] sm:$0x1]
        %v510 = vpack.c.bf16 %v498, %v498
        %512 = vrot.lane.b32.xlu0 %v510, 32
        %v513 = vpop.permute.xlu0 %512
        %v515 = vsel %vm432, %v513, 0
        %517 = vmatpush.bf16.msra.mxu0 0
        %518 = vmatpush.bf16.msra.mxu0 0
        %519 = vmatpush.bf16.msra.mxu0 0
        %520 = vmatpush.bf16.msra.mxu0 0
        %521 = vmatpush.bf16.msra.mxu0 0
        %522 = vmatpush.bf16.msra.mxu0 0
        %523 = vmatpush.bf16.msra.mxu0 %v429
        %524 = vmatpush.bf16.msra.mxu0 %v428
        %525 = vmatmul.bf16.gmra.mxu0 %v515
        %v526 = vpop.f32.mrf.mxu0
        %v527 = vadd.f32 0.0, %v526
        %v528 = vpop.f32.mrf.mxu0
        %529 = vdwg.mxu0
        %v531 = vsel %vm455, %v509, 0
        %533 = vmatpush.bf16.msra.mxu0 0
        %534 = vmatpush.bf16.msra.mxu0 0
        %535 = vmatpush.bf16.msra.mxu0 0
        %536 = vmatpush.bf16.msra.mxu0 0
        %537 = vmatpush.bf16.msra.mxu0 0
        %538 = vmatpush.bf16.msra.mxu0 0
        %539 = vmatpush.bf16.msra.mxu0 0
        %540 = vmatpush.bf16.msra.mxu0 %v453
        %541 = vmatmul.bf16.gmra.mxu0 %v531
        %v542 = vpop.f32.mrf.mxu0
        %v543 = vadd.f32 %v527, %v542
        %v544 = vpop.f32.mrf.mxu0
        %545 = vdwg.mxu0
        %v546 = vadd.f32 %v543, %v410
        %v547 = vmul.f32 %v546, 0.5
        %v548 = vtanh.pop %v547
        %v549 = vmul.f32 %v548, 0.5
        %v550 = vadd.f32 %v549, 0.5
        %v551 = vtanh.pop %v546
        %v552 = vmul.f32 %v550, %v492
        %554 = vrot.lane.b32.xlu0 %v551, 64
        %v555 = vpop.permute.xlu0 %554
        %v557 = vmul.f32 %v550, %v555
        %559 = vrot.lane.b32.xlu0 %v557, 32
        %v560 = vpop.permute.xlu0 %559
        %v562 = vadd.f32 %v552, %v560
        %v563 = vtanh.pop %v562
        %565 = vrot.lane.b32.xlu0 %v563, 64
        %v566 = vpop.permute.xlu0 %565
        %v568 = vmul.f32 %v550, %v566
        %570 = vrot.lane.b32.xlu0 %v568, 32
        %v571 = vpop.permute.xlu0 %570
        %s573 = smul.u32 %s507, 2
        %s574 = scalar_lea.vmem %s373, %s573 [#allocation10]
        %575 = vst.msk [vmem:[%s574] sm:$0x3] %vm505, %v571
        %s576 = smul.u32 %s414, 2
        %s577 = sadd.s32 %s412, %s576
        %s578 = scalar_lea.vmem %s315, %s577 [#allocation4]
        %v579 = vld [vmem:[%s578] sm:$0x1]
        %v580 = vpack.c.bf16 %v568, %v568
        %582 = vrot.lane.b32.xlu0 %v580, 32
        %v583 = vpop.permute.xlu0 %582
        %v585 = vsel %vm432, %v583, 0
        %587 = vmatpush.bf16.msra.mxu0 0
        %588 = vmatpush.bf16.msra.mxu0 0
        %589 = vmatpush.bf16.msra.mxu0 0
        %590 = vmatpush.bf16.msra.mxu0 0
        %591 = vmatpush.bf16.msra.mxu0 0
        %592 = vmatpush.bf16.msra.mxu0 0
        %593 = vmatpush.bf16.msra.mxu0 %v429
        %594 = vmatpush.bf16.msra.mxu0 %v428
        %595 = vmatmul.bf16.gmra.mxu0 %v585
        %v596 = vpop.f32.mrf.mxu0
        %v597 = vadd.f32 0.0, %v596
        %v598 = vpop.f32.mrf.mxu0
        %599 = vdwg.mxu0
        %v601 = vsel %vm455, %v579, 0
        %603 = vmatpush.bf16.msra.mxu0 0
        %604 = vmatpush.bf16.msra.mxu0 0
        %605 = vmatpush.bf16.msra.mxu0 0
        %606 = vmatpush.bf16.msra.mxu0 0
        %607 = vmatpush.bf16.msra.mxu0 0
        %608 = vmatpush.bf16.msra.mxu0 0
        %609 = vmatpush.bf16.msra.mxu0 0
        %610 = vmatpush.bf16.msra.mxu0 %v453
        %611 = vmatmul.bf16.gmra.mxu0 %v601
        %v612 = vpop.f32.mrf.mxu0
        %v613 = vadd.f32 %v597, %v612
        %v614 = vpop.f32.mrf.mxu0
        %615 = vdwg.mxu0
        %v616 = vadd.f32 %v613, %v410
        %v617 = vmul.f32 %v616, 0.5
        %v618 = vtanh.pop %v617
        %v619 = vmul.f32 %v618, 0.5
        %v620 = vadd.f32 %v619, 0.5
        %v621 = vtanh.pop %v616
        %v622 = vmul.f32 %v620, %v562
        %624 = vrot.lane.b32.xlu0 %v621, 64
        %v625 = vpop.permute.xlu0 %624
        %v627 = vmul.f32 %v620, %v625
        %629 = vrot.lane.b32.xlu0 %v627, 32
        %v630 = vpop.permute.xlu0 %629
        %v632 = vadd.f32 %v622, %v630
        %v633 = vtanh.pop %v632
        %635 = vrot.lane.b32.xlu0 %v633, 64
        %v636 = vpop.permute.xlu0 %635
        %v638 = vmul.f32 %v620, %v636
        %640 = vrot.lane.b32.xlu0 %v638, 32
        %v641 = vpop.permute.xlu0 %640
        %s643 = smul.u32 %s577, 2
        %s644 = scalar_lea.vmem %s373, %s643 [#allocation10]
        %645 = vst.msk [vmem:[%s644] sm:$0x3] %vm505, %v641
        %s646 = smul.u32 %s414, 3
        %s647 = sadd.s32 %s412, %s646
        %s648 = scalar_lea.vmem %s315, %s647 [#allocation4]
        %v649 = vld [vmem:[%s648] sm:$0x1]
        %v650 = vpack.c.bf16 %v638, %v638
        %652 = vrot.lane.b32.xlu0 %v650, 32
        %v653 = vpop.permute.xlu0 %652
        %v655 = vsel %vm432, %v653, 0
        %657 = vmatpush.bf16.msra.mxu0 0
        %658 = vmatpush.bf16.msra.mxu0 0
        %659 = vmatpush.bf16.msra.mxu0 0
        %660 = vmatpush.bf16.msra.mxu0 0
        %661 = vmatpush.bf16.msra.mxu0 0
        %662 = vmatpush.bf16.msra.mxu0 0
        %663 = vmatpush.bf16.msra.mxu0 %v429
        %664 = vmatpush.bf16.msra.mxu0 %v428
        %665 = vmatmul.bf16.gmra.mxu0 %v655
        %v666 = vpop.f32.mrf.mxu0
        %v667 = vadd.f32 0.0, %v666
        %v668 = vpop.f32.mrf.mxu0
        %669 = vdwg.mxu0
        %v671 = vsel %vm455, %v649, 0
        %673 = vmatpush.bf16.msra.mxu0 0
        %674 = vmatpush.bf16.msra.mxu0 0
        %675 = vmatpush.bf16.msra.mxu0 0
        %676 = vmatpush.bf16.msra.mxu0 0
        %677 = vmatpush.bf16.msra.mxu0 0
        %678 = vmatpush.bf16.msra.mxu0 0
        %679 = vmatpush.bf16.msra.mxu0 0
        %680 = vmatpush.bf16.msra.mxu0 %v453
        %681 = vmatmul.bf16.gmra.mxu0 %v671
        %v682 = vpop.f32.mrf.mxu0
        %v683 = vadd.f32 %v667, %v682
        %v684 = vpop.f32.mrf.mxu0
        %685 = vdwg.mxu0
        %v686 = vadd.f32 %v683, %v410
        %v687 = vmul.f32 %v686, 0.5
        %v688 = vtanh.pop %v687
        %v689 = vmul.f32 %v688, 0.5
        %v690 = vadd.f32 %v689, 0.5
        %v691 = vtanh.pop %v686
        %v692 = vmul.f32 %v690, %v632
        %694 = vrot.lane.b32.xlu0 %v691, 64
        %v695 = vpop.permute.xlu0 %694
        %v697 = vmul.f32 %v690, %v695
        %699 = vrot.lane.b32.xlu0 %v697, 32
        %v700 = vpop.permute.xlu0 %699
        %v702 = vadd.f32 %v692, %v700
        %v703 = vtanh.pop %v702
        %705 = vrot.lane.b32.xlu0 %v703, 64
        %v706 = vpop.permute.xlu0 %705
        %v708 = vmul.f32 %v690, %v706
        %710 = vrot.lane.b32.xlu0 %v708, 32
        %v711 = vpop.permute.xlu0 %710
        %s713 = smul.u32 %s647, 2
        %s714 = scalar_lea.vmem %s373, %s713 [#allocation10]
        %715 = vst.msk [vmem:[%s714] sm:$0x3] %vm505, %v711
        %s716 = smul.u32 %s414, 4
        %s717 = sadd.s32 %s412, %s716
        %s718 = scalar_lea.vmem %s315, %s717 [#allocation4]
        %v719 = vld [vmem:[%s718] sm:$0x1]
        %v720 = vpack.c.bf16 %v708, %v708
        %722 = vrot.lane.b32.xlu0 %v720, 32
        %v723 = vpop.permute.xlu0 %722
        %v725 = vsel %vm432, %v723, 0
        %727 = vmatpush.bf16.msra.mxu0 0
        %728 = vmatpush.bf16.msra.mxu0 0
        %729 = vmatpush.bf16.msra.mxu0 0
        %730 = vmatpush.bf16.msra.mxu0 0
        %731 = vmatpush.bf16.msra.mxu0 0
        %732 = vmatpush.bf16.msra.mxu0 0
        %733 = vmatpush.bf16.msra.mxu0 %v429
        %734 = vmatpush.bf16.msra.mxu0 %v428
        %735 = vmatmul.bf16.gmra.mxu0 %v725
        %v736 = vpop.f32.mrf.mxu0
        %v737 = vadd.f32 0.0, %v736
        %v738 = vpop.f32.mrf.mxu0
        %739 = vdwg.mxu0
        %v741 = vsel %vm455, %v719, 0
        %743 = vmatpush.bf16.msra.mxu0 0
        %744 = vmatpush.bf16.msra.mxu0 0
        %745 = vmatpush.bf16.msra.mxu0 0
        %746 = vmatpush.bf16.msra.mxu0 0
        %747 = vmatpush.bf16.msra.mxu0 0
        %748 = vmatpush.bf16.msra.mxu0 0
        %749 = vmatpush.bf16.msra.mxu0 0
        %750 = vmatpush.bf16.msra.mxu0 %v453
        %751 = vmatmul.bf16.gmra.mxu0 %v741
        %v752 = vpop.f32.mrf.mxu0
        %v753 = vadd.f32 %v737, %v752
        %v754 = vpop.f32.mrf.mxu0
        %755 = vdwg.mxu0
        %v756 = vadd.f32 %v753, %v410
        %v757 = vmul.f32 %v756, 0.5
        %v758 = vtanh.pop %v757
        %v759 = vmul.f32 %v758, 0.5
        %v760 = vadd.f32 %v759, 0.5
        %v761 = vtanh.pop %v756
        %v762 = vmul.f32 %v760, %v702
        %764 = vrot.lane.b32.xlu0 %v761, 64
        %v765 = vpop.permute.xlu0 %764
        %v767 = vmul.f32 %v760, %v765
        %769 = vrot.lane.b32.xlu0 %v767, 32
        %v770 = vpop.permute.xlu0 %769
        %v772 = vadd.f32 %v762, %v770
        %v773 = vtanh.pop %v772
        %775 = vrot.lane.b32.xlu0 %v773, 64
        %v776 = vpop.permute.xlu0 %775
        %v778 = vmul.f32 %v760, %v776
        %780 = vrot.lane.b32.xlu0 %v778, 32
        %v781 = vpop.permute.xlu0 %780
        %s783 = smul.u32 %s717, 2
        %s784 = scalar_lea.vmem %s373, %s783 [#allocation10]
        %785 = vst.msk [vmem:[%s784] sm:$0x3] %vm505, %v781
        %s786 = smul.u32 %s414, 5
        %s787 = sadd.s32 %s412, %s786
        %s788 = scalar_lea.vmem %s315, %s787 [#allocation4]
        %v789 = vld [vmem:[%s788] sm:$0x1]
        %v790 = vpack.c.bf16 %v778, %v778
        %792 = vrot.lane.b32.xlu0 %v790, 32
        %v793 = vpop.permute.xlu0 %792
        %v795 = vsel %vm432, %v793, 0
        %797 = vmatpush.bf16.msra.mxu0 0
        %798 = vmatpush.bf16.msra.mxu0 0
        %799 = vmatpush.bf16.msra.mxu0 0
        %800 = vmatpush.bf16.msra.mxu0 0
        %801 = vmatpush.bf16.msra.mxu0 0
        %802 = vmatpush.bf16.msra.mxu0 0
        %803 = vmatpush.bf16.msra.mxu0 %v429
        %804 = vmatpush.bf16.msra.mxu0 %v428
        %805 = vmatmul.bf16.gmra.mxu0 %v795
        %v806 = vpop.f32.mrf.mxu0
        %v807 = vadd.f32 0.0, %v806
        %v808 = vpop.f32.mrf.mxu0
        %809 = vdwg.mxu0
        %v811 = vsel %vm455, %v789, 0
        %813 = vmatpush.bf16.msra.mxu0 0
        %814 = vmatpush.bf16.msra.mxu0 0
        %815 = vmatpush.bf16.msra.mxu0 0
        %816 = vmatpush.bf16.msra.mxu0 0
        %817 = vmatpush.bf16.msra.mxu0 0
        %818 = vmatpush.bf16.msra.mxu0 0
        %819 = vmatpush.bf16.msra.mxu0 0
        %820 = vmatpush.bf16.msra.mxu0 %v453
        %821 = vmatmul.bf16.gmra.mxu0 %v811
        %v822 = vpop.f32.mrf.mxu0
        %v823 = vadd.f32 %v807, %v822
        %v824 = vpop.f32.mrf.mxu0
        %825 = vdwg.mxu0
        %v826 = vadd.f32 %v823, %v410
        %v827 = vmul.f32 %v826, 0.5
        %v828 = vtanh.pop %v827
        %v829 = vmul.f32 %v828, 0.5
        %v830 = vadd.f32 %v829, 0.5
        %v831 = vtanh.pop %v826
        %v832 = vmul.f32 %v830, %v772
        %834 = vrot.lane.b32.xlu0 %v831, 64
        %v835 = vpop.permute.xlu0 %834
        %v837 = vmul.f32 %v830, %v835
        %839 = vrot.lane.b32.xlu0 %v837, 32
        %v840 = vpop.permute.xlu0 %839
        %v842 = vadd.f32 %v832, %v840
        %v843 = vtanh.pop %v842
        %845 = vrot.lane.b32.xlu0 %v843, 64
        %v846 = vpop.permute.xlu0 %845
        %v848 = vmul.f32 %v830, %v846
        %850 = vrot.lane.b32.xlu0 %v848, 32
        %v851 = vpop.permute.xlu0 %850
        %s853 = smul.u32 %s787, 2
        %s854 = scalar_lea.vmem %s373, %s853 [#allocation10]
        %855 = vst.msk [vmem:[%s854] sm:$0x3] %vm505, %v851
        %s856 = smul.u32 %s414, 6
        %s857 = sadd.s32 %s412, %s856
        %s858 = scalar_lea.vmem %s315, %s857 [#allocation4]
        %v859 = vld [vmem:[%s858] sm:$0x1]
        %v860 = vpack.c.bf16 %v848, %v848
        %862 = vrot.lane.b32.xlu0 %v860, 32
        %v863 = vpop.permute.xlu0 %862
        %v865 = vsel %vm432, %v863, 0
        %867 = vmatpush.bf16.msra.mxu0 0
        %868 = vmatpush.bf16.msra.mxu0 0
        %869 = vmatpush.bf16.msra.mxu0 0
        %870 = vmatpush.bf16.msra.mxu0 0
        %871 = vmatpush.bf16.msra.mxu0 0
        %872 = vmatpush.bf16.msra.mxu0 0
        %873 = vmatpush.bf16.msra.mxu0 %v429
        %874 = vmatpush.bf16.msra.mxu0 %v428
        %875 = vmatmul.bf16.gmra.mxu0 %v865
        %v876 = vpop.f32.mrf.mxu0
        %v877 = vadd.f32 0.0, %v876
        %v878 = vpop.f32.mrf.mxu0
        %879 = vdwg.mxu0
        %v881 = vsel %vm455, %v859, 0
        %883 = vmatpush.bf16.msra.mxu0 0
        %884 = vmatpush.bf16.msra.mxu0 0
        %885 = vmatpush.bf16.msra.mxu0 0
        %886 = vmatpush.bf16.msra.mxu0 0
        %887 = vmatpush.bf16.msra.mxu0 0
        %888 = vmatpush.bf16.msra.mxu0 0
        %889 = vmatpush.bf16.msra.mxu0 0
        %890 = vmatpush.bf16.msra.mxu0 %v453
        %891 = vmatmul.bf16.gmra.mxu0 %v881
        %v892 = vpop.f32.mrf.mxu0
        %v893 = vadd.f32 %v877, %v892
        %v894 = vpop.f32.mrf.mxu0
        %895 = vdwg.mxu0
        %v896 = vadd.f32 %v893, %v410
        %v897 = vmul.f32 %v896, 0.5
        %v898 = vtanh.pop %v897
        %v899 = vmul.f32 %v898, 0.5
        %v900 = vadd.f32 %v899, 0.5
        %v901 = vtanh.pop %v896
        %v902 = vmul.f32 %v900, %v842
        %904 = vrot.lane.b32.xlu0 %v901, 64
        %v905 = vpop.permute.xlu0 %904
        %v907 = vmul.f32 %v900, %v905
        %909 = vrot.lane.b32.xlu0 %v907, 32
        %v910 = vpop.permute.xlu0 %909
        %v912 = vadd.f32 %v902, %v910
        %v913 = vtanh.pop %v912
        %915 = vrot.lane.b32.xlu0 %v913, 64
        %v916 = vpop.permute.xlu0 %915
        %v918 = vmul.f32 %v900, %v916
        %920 = vrot.lane.b32.xlu0 %v918, 32
        %v921 = vpop.permute.xlu0 %920
        %s923 = smul.u32 %s857, 2
        %s924 = scalar_lea.vmem %s373, %s923 [#allocation10]
        %925 = vst.msk [vmem:[%s924] sm:$0x3] %vm505, %v921
        %s926 = smul.u32 %s414, 7
        %s927 = sadd.s32 %s412, %s926
        %s928 = scalar_lea.vmem %s315, %s927 [#allocation4]
        %v929 = vld [vmem:[%s928] sm:$0x1]
        %v930 = vpack.c.bf16 %v918, %v918
        %932 = vrot.lane.b32.xlu0 %v930, 32
        %v933 = vpop.permute.xlu0 %932
        %v935 = vsel %vm432, %v933, 0
        %937 = vmatpush.bf16.msra.mxu0 0
        %938 = vmatpush.bf16.msra.mxu0 0
        %939 = vmatpush.bf16.msra.mxu0 0
        %940 = vmatpush.bf16.msra.mxu0 0
        %941 = vmatpush.bf16.msra.mxu0 0
        %942 = vmatpush.bf16.msra.mxu0 0
        %943 = vmatpush.bf16.msra.mxu0 %v429
        %944 = vmatpush.bf16.msra.mxu0 %v428
        %945 = vmatmul.bf16.gmra.mxu0 %v935
        %v946 = vpop.f32.mrf.mxu0
        %v947 = vadd.f32 0.0, %v946
        %v948 = vpop.f32.mrf.mxu0
        %949 = vdwg.mxu0
        %v951 = vsel %vm455, %v929, 0
        %953 = vmatpush.bf16.msra.mxu0 0
        %954 = vmatpush.bf16.msra.mxu0 0
        %955 = vmatpush.bf16.msra.mxu0 0
        %956 = vmatpush.bf16.msra.mxu0 0
        %957 = vmatpush.bf16.msra.mxu0 0
        %958 = vmatpush.bf16.msra.mxu0 0
        %959 = vmatpush.bf16.msra.mxu0 0
        %960 = vmatpush.bf16.msra.mxu0 %v453
        %961 = vmatmul.bf16.gmra.mxu0 %v951
        %v962 = vpop.f32.mrf.mxu0
        %v963 = vadd.f32 %v947, %v962
        %v964 = vpop.f32.mrf.mxu0
        %965 = vdwg.mxu0
        %v966 = vadd.f32 %v963, %v410
        %v967 = vmul.f32 %v966, 0.5
        %v968 = vtanh.pop %v967
        %v969 = vmul.f32 %v968, 0.5
        %v970 = vadd.f32 %v969, 0.5
        %v971 = vtanh.pop %v966
        %v972 = vmul.f32 %v970, %v912
        %974 = vrot.lane.b32.xlu0 %v971, 64
        %v975 = vpop.permute.xlu0 %974
        %v977 = vmul.f32 %v970, %v975
        %979 = vrot.lane.b32.xlu0 %v977, 32
        %v980 = vpop.permute.xlu0 %979
        %v982 = vadd.f32 %v972, %v980
        %v983 = vtanh.pop %v982
        %985 = vrot.lane.b32.xlu0 %v983, 64
        %v986 = vpop.permute.xlu0 %985
        %v988 = vmul.f32 %v970, %v986
        %990 = vrot.lane.b32.xlu0 %v988, 32
        %v991 = vpop.permute.xlu0 %990
        %s993 = smul.u32 %s927, 2
        %s994 = scalar_lea.vmem %s373, %s993 [#allocation10]
        %995 = vst.msk [vmem:[%s994] sm:$0x3] %vm505, %v991
        %996 = vst.msk [vmem:[#allocation2] sm:$0x3] %vm505, %v991
        %998 = vrot.lane.b32.xlu0 %v982, 96
        %v999 = vpop.permute.xlu0 %998
        %1001 = vst.msk [vmem:[#allocation3] sm:$0x3] %vm505, %v999
        // Predicated region
        $region53: #{tpu_custom_call.1} parent=35 // pred_check
          %p1002 = pneg %p395
        $region54: #{tpu_custom_call.1} parent=35 // pred_check_branch
          %1004 = sbr.rel (%p1002) target = $region56
        $region55: #{tpu_custom_call.1} parent=35 // pred_region
          %1005 = vst.msk [vmem:[%s380] sm:$0x3] %vm505, %v999
        $region56: #{tpu_custom_call.1} parent=35 // pred_fallthru
          _
        %s1006 = sand.u32 %s171, 1
        %s1007 = scalar_lea.sflag [#allocation6], %s1006
        %s1008 = sand.u32 %s171, 1
        %s1009 = smul.addr %s1008, 16
        %s1010 = scalar_lea.vmem [#allocation10], %s1009
        %s1011 = sand.u32 %s197, 1
        %s1012 = scalar_lea.sflag [#allocation12], %s1011
        %s1013 = sand.u32 %s197, 1
        %s1014 = smul.addr %s1013, 2
        %s1015 = scalar_lea.vmem [#allocation11], %s1014
        // Predicated region
        $region57: #{tpu_custom_call.1} parent=35 // pred_check
          %p1016 = pneg %p181
        $region58: #{tpu_custom_call.1} parent=35 // pred_check_branch
          %1018 = sbr.rel (%p1016) target = $region60
        $region59: #{tpu_custom_call.1} parent=35 // pred_region
          %s1019 = smul.u32 %s34, 2
          %s1020 = ssub.s32 0, %s1019
          %s1021 = smul.u32 %s33, %s1020
          %s1022 = sadd.s32 %s34, %s1021
          %s1023 = smul.u32 8, %s1022
          %1025 = vsyncadd %s1007, 0
          %s1026 = smul.addr %s33, 8
          %s1027 = sadd.s32 %s1023, %s1026
          %s1028 = smul.addr %s1027, 2
          %s1029 = scalar_lea.hbm %s4, %s1028
          %s1030 = sshll.u32 %s1010, 4
          %s1031 = int_to_ptr.vmem [resolvable:$true] %s1030
          %s1032 = sshll.u32 %s1029, 4
          %s1033 = int_to_ptr.hbm [resolvable:$true] %s1032
          %1038 = dma.vmem_to_hbm [thread:$0]  %s1031, 256, %s1033, %s1007, 32, 32, 2
        $region60: #{tpu_custom_call.1} parent=35 // pred_fallthru
          _
        // Predicated region
        $region61: #{tpu_custom_call.1} parent=35 // pred_check
          %p1039 = pneg %p207
        $region62: #{tpu_custom_call.1} parent=35 // pred_check_branch
          %1041 = sbr.rel (%p1039) target = $region64
        $region63: #{tpu_custom_call.1} parent=35 // pred_region
          %1043 = vsyncadd %s1012, 0
          %s1044 = smul.addr %s33, 2
          %s1045 = scalar_lea.hbm %s5, %s1044
          %s1047 = sshll.u32 %s1015, 4
          %s1048 = int_to_ptr.vmem [resolvable:$true] %s1047
          %s1049 = sshll.u32 %s1045, 4
          %s1050 = int_to_ptr.hbm [resolvable:$true] %s1049
          %1052 = dma.vmem_to_hbm [thread:$0]  %s1048, 32, %s1050, %s1012
        $region64: #{tpu_custom_call.1} parent=35 // pred_fallthru
          _
      $region36: #{tpu_custom_call.1} parent=5 // pred_fallthru
        _
      %p1053 = scmp.le.s32.totalorder 2, %s24
      // Predicated region
      $region65: #{tpu_custom_call.1} parent=5 // pred_check
        %p1054 = pneg %p1053
      $region66: #{tpu_custom_call.1} parent=5 // pred_check_branch
        %1056 = sbr.rel (%p1054) target = $region68
      $region67: #{tpu_custom_call.1} parent=5 // pred_region
        %s1057 = ssub.s32 %s24, 2
        // Predicated region
        $region69: #{tpu_custom_call.1} parent=67 // pred_check
          %p1058 = pneg %p187
        $region70: #{tpu_custom_call.1} parent=67 // pred_check_branch
          %1060 = sbr.rel (%p1058) target = $region72
        $region71: #{tpu_custom_call.1} parent=67 // pred_region
          %s1061 = sand.u32 %s172, 1
          %s1062 = scalar_lea.sflag [#allocation6], %s1061
          %s1063 = sand.u32 %s172, 1
          %s1064 = smul.addr %s1063, 16
          %s1065 = scalar_lea.vmem [#allocation10], %s1064
          %1067 = dma.done %s1062, 256
        $region72: #{tpu_custom_call.1} parent=67 // pred_fallthru
          _
        // Predicated region
        $region73: #{tpu_custom_call.1} parent=67 // pred_check
          %p1068 = pneg %p213
        $region74: #{tpu_custom_call.1} parent=67 // pred_check_branch
          %1070 = sbr.rel (%p1068) target = $region76
        $region75: #{tpu_custom_call.1} parent=67 // pred_region
          %s1071 = sand.u32 %s198, 1
          %s1072 = scalar_lea.sflag [#allocation12], %s1071
          %s1073 = sand.u32 %s198, 1
          %s1074 = smul.addr %s1073, 2
          %s1075 = scalar_lea.vmem [#allocation11], %s1074
          %1077 = dma.done %s1072, 32
        $region76: #{tpu_custom_call.1} parent=67 // pred_fallthru
          _
      $region68: #{tpu_custom_call.1} parent=5 // pred_fallthru
        _
    $region6: #{tpu_custom_call.1} parent=1 // loop_footer
      %s28 = sadd.s32 1, %s24
    $region7: #{tpu_custom_call.1} parent=1 // loop_footer_branch
      %23 = sbr.rel target = $region3
    $region8: #{tpu_custom_call.1} parent=1 // loop_exit
      _
    %1078 = vsyncpa [#allocation5], 1
    %s1079 = scalar_lea.sflag [#allocation5], 1
    %1080 = vsyncpa %s1079, 1
    %1081 = vsyncpa [#allocation8], 1
    %s1082 = scalar_lea.sflag [#allocation8], 1
    %1083 = vsyncpa %s1082, 1
    %1084 = vsyncpa [#allocation6], 1
    %s1085 = scalar_lea.sflag [#allocation6], 1
    %1086 = vsyncpa %s1085, 1
    %1087 = vsyncpa [#allocation12], 1
    %s1088 = scalar_lea.sflag [#allocation12], 1
    %1089 = vsyncpa %s1088, 1

</llo_original>
